<compile_context>
chip_gen: v5e
topology: v5e:2x2
jax: 0.10.0
libtpu: 0.0.40
codegen_flags: <defaults>
</compile_context>

<pallas_src>
import math
from functools import partial

import jax
import jax.numpy as jnp
from jax.experimental import pallas as pl
from jax.experimental.pallas import tpu as pltpu

_VMEM_LIMIT = 64 * 1024 * 1024  # explicit scoped-VMEM budget (fits v7x's 64 MiB physical)


def _tile(dim, prefs):
    """Largest preferred tile that divides `dim`, else the full dim (always legal)."""
    for p in prefs:
        if dim >= p and dim % p == 0:
            return p
    return dim


# ----------------------------- Pallas kernels -----------------------------

def _matmul_kernel(x_ref, w_ref, b_ref, o_ref, acc_ref, *, activation):
    k = pl.program_id(2)

    @pl.when(k == 0)
    def _():
        acc_ref[...] = jnp.zeros_like(acc_ref)

    acc_ref[...] += jnp.dot(x_ref[...], w_ref[...], preferred_element_type=jnp.float32)

    @pl.when(k == pl.num_programs(2) - 1)
    def _():
        y = acc_ref[...] + b_ref[...].astype(jnp.float32)
        if activation == "gelu":
            # TODO(synk): HF BERT uses exact erf-GELU; tanh approximation used here.
            c = 0.7978845608028654  # sqrt(2/pi)
            y = 0.5 * y * (1.0 + jnp.tanh(c * (y + 0.044715 * y * y * y)))
        o_ref[...] = y.astype(o_ref.dtype)


def linear(x, w, b, activation=None, out_dtype=None):
    M, K = x.shape
    N = w.shape[1]
    out_dtype = out_dtype or x.dtype
    # Big output-stationary tiles: fewer weight re-streams per M tile, fewer
    # activation re-reads per N tile (768 divides BERT-base H/3H/4H widths).
    tm = _tile(M, (512, 256, 128))
    tn = _tile(N, (768, 512, 256, 128))
    tk = _tile(K, (768, 512, 256))
    # TODO(synk): consider pipeline_mode=pl.Buffered(3) on the weight spec if the
    # bundle dump shows exposed DMA on long-K sweeps.
    return pl.pallas_call(
        partial(_matmul_kernel, activation=activation),
        out_shape=jax.ShapeDtypeStruct((M, N), out_dtype),
        grid=(M // tm, N // tn, K // tk),
        in_specs=[pl.BlockSpec((tm, tk), lambda i, j, k: (i, k)),
                  pl.BlockSpec((tk, tn), lambda i, j, k: (k, j)),
                  pl.BlockSpec((1, tn), lambda i, j, k: (0, j))],
        out_specs=pl.BlockSpec((tm, tn), lambda i, j, k: (i, j)),
        scratch_shapes=[pltpu.VMEM((tm, tn), jnp.float32)],
        compiler_params=pltpu.CompilerParams(
            dimension_semantics=("parallel", "parallel", "arbitrary"),
            vmem_limit_bytes=_VMEM_LIMIT),
    )(x, w, b.reshape(1, N))


def _matmul_ln_kernel(x_ref, w_ref, b_ref, r_ref, g_ref, be_ref, o_ref, acc_ref, *, eps):
    k = pl.program_id(1)

    @pl.when(k == 0)
    def _():
        acc_ref[...] = jnp.zeros_like(acc_ref)

    acc_ref[...] += jnp.dot(x_ref[...], w_ref[...], preferred_element_type=jnp.float32)

    @pl.when(k == pl.num_programs(1) - 1)
    def _():
        y = acc_ref[...] + b_ref[...].astype(jnp.float32) + r_ref[...].astype(jnp.float32)
        mu = jnp.mean(y, axis=-1, keepdims=True)
        var = jnp.mean((y - mu) * (y - mu), axis=-1, keepdims=True)
        y = (y - mu) * jax.lax.rsqrt(var + eps)
        y = y * g_ref[...].astype(jnp.float32) + be_ref[...].astype(jnp.float32)
        o_ref[...] = y.astype(o_ref.dtype)


def linear_residual_ln(x, w, b, residual, gamma, beta, eps):
    """out = LayerNorm(x @ w + b + residual); LN is over the full N, so N untiled."""
    M, K = x.shape
    N = w.shape[1]
    tm = _tile(M, (512, 256, 128))
    tk = _tile(K, (768, 512, 256))
    return pl.pallas_call(
        partial(_matmul_ln_kernel, eps=eps),
        out_shape=jax.ShapeDtypeStruct((M, N), residual.dtype),
        grid=(M // tm, K // tk),
        in_specs=[pl.BlockSpec((tm, tk), lambda i, k: (i, k)),
                  pl.BlockSpec((tk, N), lambda i, k: (k, 0)),
                  pl.BlockSpec((1, N), lambda i, k: (0, 0)),
                  pl.BlockSpec((tm, N), lambda i, k: (i, 0)),
                  pl.BlockSpec((1, N), lambda i, k: (0, 0)),
                  pl.BlockSpec((1, N), lambda i, k: (0, 0))],
        out_specs=pl.BlockSpec((tm, N), lambda i, k: (i, 0)),
        scratch_shapes=[pltpu.VMEM((tm, N), jnp.float32)],
        compiler_params=pltpu.CompilerParams(
            dimension_semantics=("parallel", "arbitrary"),
            vmem_limit_bytes=_VMEM_LIMIT),
    )(x, w, b.reshape(1, N), residual, gamma.reshape(1, N), beta.reshape(1, N))


def _emb_ln_kernel(we_ref, te_ref, pe_ref, g_ref, b_ref, o_ref, *, eps):
    # Fused word + token-type + position embedding sum, then LayerNorm.
    x = (we_ref[0].astype(jnp.float32) + te_ref[0].astype(jnp.float32)
         + pe_ref[...].astype(jnp.float32))
    mu = jnp.mean(x, axis=-1, keepdims=True)
    var = jnp.mean((x - mu) * (x - mu), axis=-1, keepdims=True)
    y = (x - mu) * jax.lax.rsqrt(var + eps)
    y = y * g_ref[...].astype(jnp.float32) + b_ref[...].astype(jnp.float32)
    o_ref[0] = y.astype(o_ref.dtype)


def embeddings_layernorm(we, te, pe, gamma, beta, eps, out_dtype):
    """LayerNorm(word_emb + type_emb + pos_emb); pos table streamed as (S, H)."""
    B, S, H = we.shape
    ts = _tile(S, (512, 256, 128))
    return pl.pallas_call(
        partial(_emb_ln_kernel, eps=eps),
        out_shape=jax.ShapeDtypeStruct((B, S, H), out_dtype),
        grid=(B, S // ts),
        in_specs=[pl.BlockSpec((1, ts, H), lambda b, s: (b, s, 0)),
                  pl.BlockSpec((1, ts, H), lambda b, s: (b, s, 0)),
                  pl.BlockSpec((ts, H), lambda b, s: (s, 0)),
                  pl.BlockSpec((1, H), lambda b, s: (0, 0)),
                  pl.BlockSpec((1, H), lambda b, s: (0, 0))],
        out_specs=pl.BlockSpec((1, ts, H), lambda b, s: (b, s, 0)),
        compiler_params=pltpu.CompilerParams(
            dimension_semantics=("parallel", "parallel"),
            vmem_limit_bytes=_VMEM_LIMIT),
    )(we, te, pe, gamma.reshape(1, H), beta.reshape(1, H))


def _flash_attn_kernel(q_ref, k_ref, v_ref, m_ref, o_ref, m_sc, l_sc, acc_sc, *, scale):
    # q_ref/k_ref/v_ref: (1, 1, tile, D) bf16; m_ref: (1, 1, tkv) f32 additive mask.
    ki = pl.program_id(3)

    @pl.when(ki == 0)
    def _():
        m_sc[...] = jnp.full(m_sc.shape, -1e30, jnp.float32)
        l_sc[...] = jnp.zeros_like(l_sc)
        acc_sc[...] = jnp.zeros_like(acc_sc)

    q = q_ref[0, 0]                                    # (tq, D) bf16
    k = k_ref[0, 0]                                    # (tkv, D) bf16
    v = v_ref[0, 0]                                    # (tkv, D) bf16
    s = jax.lax.dot_general(q, k, (((1,), (1,)), ((), ())),
                            preferred_element_type=jnp.float32) * scale  # (tq, tkv)
    s = s + m_ref[0]                                   # (1, tkv) broadcast over rows

    m_prev = m_sc[...]                                 # (tq, 1)
    m_new = jnp.maximum(m_prev, jnp.max(s, axis=-1, keepdims=True))
    alpha = jnp.exp(m_prev - m_new)
    p = jnp.exp(s - m_new)
    l_sc[...] = alpha * l_sc[...] + jnp.sum(p, axis=-1, keepdims=True)
    acc_sc[...] = alpha * acc_sc[...] + jnp.dot(p.astype(v.dtype), v,
                                                preferred_element_type=jnp.float32)
    m_sc[...] = m_new

    @pl.when(ki == pl.num_programs(3) - 1)
    def _():
        # TODO(synk): per-head D (=64 on BERT-base) underuses the 256-wide MXU; a
        # batched dot over a head axis inside the block could pack it tighter.
        o_ref[0, 0] = (acc_sc[...] *
                       pl.reciprocal(l_sc[...], approx=True)).astype(o_ref.dtype)


def attention(q, k, v, ext_mask):
    # q, k, v: (B, nH, S, D) bf16; ext_mask: (B, 1, S) additive mask ((1-mask)*-10000).
    B, nH, S, D = q.shape
    scale = 1.0 / math.sqrt(D)
    tq = _tile(S, (128,))
    tkv = _tile(S, (128,))
    return pl.pallas_call(
        partial(_flash_attn_kernel, scale=scale),
        out_shape=jax.ShapeDtypeStruct((B, nH, S, D), q.dtype),
        grid=(B, nH, S // tq, S // tkv),
        in_specs=[pl.BlockSpec((1, 1, tq, D), lambda b, h, qi, ki: (b, h, qi, 0)),
                  pl.BlockSpec((1, 1, tkv, D), lambda b, h, qi, ki: (b, h, ki, 0)),
                  pl.BlockSpec((1, 1, tkv, D), lambda b, h, qi, ki: (b, h, ki, 0)),
                  pl.BlockSpec((1, 1, tkv), lambda b, h, qi, ki: (b, 0, ki))],
        out_specs=pl.BlockSpec((1, 1, tq, D), lambda b, h, qi, ki: (b, h, qi, 0)),
        scratch_shapes=[pltpu.VMEM((tq, 1), jnp.float32),
                        pltpu.VMEM((tq, 1), jnp.float32),
                        pltpu.VMEM((tq, D), jnp.float32)],
        compiler_params=pltpu.CompilerParams(
            dimension_semantics=("parallel", "parallel", "parallel", "arbitrary"),
            vmem_limit_bytes=_VMEM_LIMIT),
    )(q, k, v, ext_mask)


# ----------------------------- Model (glue in JAX) -----------------------------

class BertConfig:
    vocab_size = 128
    hidden = 32
    n_heads = 4
    n_layers = 2
    intermediate = 64
    max_pos = 16
    type_vocab = 2
    ln_eps = 1e-12
    n_class = 2          # task == 'CLASSIFICATION'


def init_params(key, cfg):
    def nrm(k, shape, std=0.02, dtype=jnp.float32):
        return (std * jax.random.normal(k, shape)).astype(dtype)

    keys = iter(jax.random.split(key, 4 + 4 * cfg.n_layers))
    H, I = cfg.hidden, cfg.intermediate
    params = {
        "word_emb": nrm(next(keys), (cfg.vocab_size, H)),
        "pos_emb": nrm(next(keys), (cfg.max_pos, H)),
        "type_emb": nrm(next(keys), (cfg.type_vocab, H)),
        "emb_ln_g": jnp.ones((H,), jnp.float32),
        "emb_ln_b": jnp.zeros((H,), jnp.float32),
        # classification head (torch.nn.init.normal_(w, std=0.02), bias zero)
        "l0_w": nrm(next(keys), (H, cfg.n_class), dtype=jnp.bfloat16),
        "l0_b": jnp.zeros((cfg.n_class,), jnp.float32),
        "layers": [],
    }
    for _ in range(cfg.n_layers):
        layer = {
            # fused Q|K|V projection (H, 3H) — same math as three separate matmuls
            "wqkv": nrm(next(keys), (H, 3 * H), dtype=jnp.bfloat16),
            "bqkv": jnp.zeros((3 * H,), jnp.float32),
            "wo": nrm(next(keys), (H, H), dtype=jnp.bfloat16),
            "bo": jnp.zeros((H,), jnp.float32),
            "ln1_g": jnp.ones((H,), jnp.float32), "ln1_b": jnp.zeros((H,), jnp.float32),
            "w1": nrm(next(keys), (H, I), dtype=jnp.bfloat16),
            "b1": jnp.zeros((I,), jnp.float32),
            "w2": nrm(next(keys), (I, H), dtype=jnp.bfloat16),
            "b2": jnp.zeros((H,), jnp.float32),
            "ln2_g": jnp.ones((H,), jnp.float32), "ln2_b": jnp.zeros((H,), jnp.float32),
        }
        params["layers"].append(layer)
    return params


def bert_forward(params, ids, mask, token_type_ids, cfg):
    B, S = ids.shape
    H, nH = cfg.hidden, cfg.n_heads
    D = H // nH
    M = B * S

    # BertEmbeddings: gathers in XLA, word+type+pos sum + LayerNorm fused in Pallas.
    we = jnp.take(params["word_emb"], ids, axis=0)                  # (B, S, H) f32
    te = jnp.take(params["type_emb"], token_type_ids, axis=0)       # (B, S, H) f32
    pe = params["pos_emb"][:S]                                      # (S, H) f32
    h = embeddings_layernorm(we, te, pe, params["emb_ln_g"], params["emb_ln_b"],
                             cfg.ln_eps, out_dtype=jnp.bfloat16).reshape(M, H)
    # TODO(synk): embedding/attention/hidden dropouts are identity (inference mode).

    ext_mask = ((1.0 - mask.astype(jnp.float32)) * -10000.0).reshape(B, 1, S)

    for layer in params["layers"]:
        qkv = linear(h, layer["wqkv"], layer["bqkv"])                     # (M, 3H)
        qkv = qkv.reshape(B, S, 3, nH, D).transpose(2, 0, 3, 1, 4)        # (3, B, nH, S, D)
        ctx = attention(qkv[0], qkv[1], qkv[2], ext_mask)                 # (B, nH, S, D)
        ctx = ctx.transpose(0, 2, 1, 3).reshape(M, H)                     # (M, H)
        h = linear_residual_ln(ctx, layer["wo"], layer["bo"],
                               h, layer["ln1_g"], layer["ln1_b"], cfg.ln_eps)
        inter = linear(h, layer["w1"], layer["b1"], activation="gelu")    # (M, I)
        h = linear_residual_ln(inter, layer["w2"], layer["b2"],
                               h, layer["ln2_g"], layer["ln2_b"], cfg.ln_eps)

    hidden_state = h.reshape(B, S, H)
    pooled = hidden_state[:, 0]                                     # (B, H) == output[0][:, 0]
    # TODO(synk): nn.Dropout(0.3) on pooled is identity (inference mode).
    # Tiny classification head: plain XLA GEMM (a pallas_call here is pure overhead).
    out = jnp.dot(pooled.astype(jnp.float32),
                  params["l0_w"].astype(jnp.float32)) + params["l0_b"]
    return out                                                      # (B, n_class)


if __name__ == "__main__":
    cfg = BertConfig()
    key = jax.random.PRNGKey(0)
    pkey, ikey = jax.random.split(key, 2)
    params = init_params(pkey, cfg)

    B, S = 2, 8
    ids = jax.random.randint(ikey, (B, S), 0, cfg.vocab_size, dtype=jnp.int32)
    mask = jnp.ones((B, S), dtype=jnp.int32).at[1, 6:].set(0)       # second sequence padded
    token_type_ids = jnp.zeros((B, S), dtype=jnp.int32).at[:, S // 2:].set(1)

    fwd = jax.jit(lambda p, i, m, t: bert_forward(p, i, m, t, cfg))
    out = fwd(params, ids, mask, token_type_ids)
    out = jax.block_until_ready(out)
    assert out.shape == (B, cfg.n_class)
    print("KERNEL_OK")
</pallas_src>

<mosaic_0001>
module attributes {stable_mosaic.version = 11 : i64} {
  func.func @_matmul_kernel(%arg0: i32, %arg1: i32, %arg2: i32, %arg3: memref<16x32xbf16, #tpu.memory_space<vmem>>, %arg4: memref<32x96xbf16, #tpu.memory_space<vmem>>, %arg5: memref<1x96xf32, #tpu.memory_space<vmem>>, %arg6: memref<16x96xbf16, #tpu.memory_space<vmem>>, %arg7: memref<16x96xf32, #tpu.memory_space<vmem>>) attributes {dimension_semantics = [#tpu.dimension_semantics<parallel>, #tpu.dimension_semantics<parallel>, #tpu.dimension_semantics<arbitrary>], iteration_bounds = array<i64: 1, 1, 1>, scalar_prefetch = 0 : i64, scratch_operands = 1 : i64, tpu.core_type = #tpu.core_type<tc>, window_params = [{transform_indices = @transform_0, window_bounds = array<i64: 16, 32>}, {transform_indices = @transform_1, window_bounds = array<i64: 32, 96>}, {transform_indices = @transform_2, window_bounds = array<i64: 1, 96>}, {transform_indices = @transform_3, window_bounds = array<i64: 16, 96>}]} {
    %c0_i32 = arith.constant 0 : i32
    %0 = arith.cmpi eq, %arg2, %c0_i32 : i32
    %1 = arith.extui %0 : i1 to i32
    %c0_i32_0 = arith.constant 0 : i32
    %2 = arith.cmpi ne, %1, %c0_i32_0 : i32
    scf.if %2 {
      %cst_10 = arith.constant 0.000000e+00 : f32
      %12 = vector.broadcast %cst_10 : f32 to vector<16x96xf32>
      %c0_11 = arith.constant 0 : index
      %c0_12 = arith.constant 0 : index
      %13 = vector.load %arg7[%c0_11, %c0_12] : memref<16x96xf32, #tpu.memory_space<vmem>>, vector<16x96xf32>
      tpu.vector_store %arg7[%c0_11, %c0_12], %12 {strides = array<i32>} : memref<16x96xf32, #tpu.memory_space<vmem>>, vector<16x96xf32>,
    } else {
    }
    %c0 = arith.constant 0 : index
    %c0_1 = arith.constant 0 : index
    %3 = vector.load %arg7[%c0, %c0_1] : memref<16x96xf32, #tpu.memory_space<vmem>>, vector<16x96xf32>
    %c0_2 = arith.constant 0 : index
    %c0_3 = arith.constant 0 : index
    %4 = vector.load %arg3[%c0_2, %c0_3] : memref<16x32xbf16, #tpu.memory_space<vmem>>, vector<16x32xbf16>
    %c0_4 = arith.constant 0 : index
    %c0_5 = arith.constant 0 : index
    %5 = vector.load %arg4[%c0_4, %c0_5] : memref<32x96xbf16, #tpu.memory_space<vmem>>, vector<32x96xbf16>
    %cst = arith.constant dense<0.000000e+00> : vector<16x96xf32>
    %6 = tpu.matmul %4, %5, %cst {dimension_numbers = #tpu.dot_dimension_numbers<[1], [0], [0], [1], [0, 0, 1, 1], [], []>} : vector<16x32xbf16>, vector<32x96xbf16>, vector<16x96xf32> -> vector<16x96xf32>
    %7 = arith.addf %3, %6 : vector<16x96xf32>
    %c0_6 = arith.constant 0 : index
    %c0_7 = arith.constant 0 : index
    %8 = vector.load %arg7[%c0_6, %c0_7] : memref<16x96xf32, #tpu.memory_space<vmem>>, vector<16x96xf32>
    tpu.vector_store %arg7[%c0_6, %c0_7], %7 {strides = array<i32>} : memref<16x96xf32, #tpu.memory_space<vmem>>, vector<16x96xf32>,
    %c0_i32_8 = arith.constant 0 : i32
    %9 = arith.cmpi eq, %arg2, %c0_i32_8 : i32
    %10 = arith.extui %9 : i1 to i32
    %c0_i32_9 = arith.constant 0 : i32
    %11 = arith.cmpi ne, %10, %c0_i32_9 : i32
    scf.if %11 {
      %c0_10 = arith.constant 0 : index
      %c0_11 = arith.constant 0 : index
      %12 = vector.load %arg7[%c0_10, %c0_11] : memref<16x96xf32, #tpu.memory_space<vmem>>, vector<16x96xf32>
      %c0_12 = arith.constant 0 : index
      %c0_13 = arith.constant 0 : index
      %13 = vector.load %arg5[%c0_12, %c0_13] : memref<1x96xf32, #tpu.memory_space<vmem>>, vector<1x96xf32>
      %14 = vector.broadcast %13 : vector<1x96xf32> to vector<16x96xf32>
      %15 = arith.addf %12, %14 : vector<16x96xf32>
      %16 = arith.truncf %15 : vector<16x96xf32> to vector<16x96xbf16>
      %c0_14 = arith.constant 0 : index
      %c0_15 = arith.constant 0 : index
      %17 = vector.load %arg6[%c0_14, %c0_15] : memref<16x96xbf16, #tpu.memory_space<vmem>>, vector<16x96xbf16>
      tpu.vector_store %arg6[%c0_14, %c0_15], %16 {strides = array<i32>} : memref<16x96xbf16, #tpu.memory_space<vmem>>, vector<16x96xbf16>,
    } else {
    }
    return
  }
  func.func @transform_0(%arg0: i32, %arg1: i32, %arg2: i32) -> (i32, i32) {
    %c0_i32 = arith.constant 0 : i32
    return %arg0, %arg2 : i32, i32
  }
  func.func @transform_1(%arg0: i32, %arg1: i32, %arg2: i32) -> (i32, i32) {
    %c0_i32 = arith.constant 0 : i32
    return %arg2, %arg1 : i32, i32
  }
  func.func @transform_2(%arg0: i32, %arg1: i32, %arg2: i32) -> (i32, i32) {
    %c0_i32 = arith.constant 0 : i32
    %c0_i32_0 = arith.constant 0 : i32
    return %c0_i32, %arg1 : i32, i32
  }
  func.func @transform_3(%arg0: i32, %arg1: i32, %arg2: i32) -> (i32, i32) {
    %c0_i32 = arith.constant 0 : i32
    return %arg0, %arg1 : i32, i32
  }
}

module attributes {stable_mosaic.version = 11 : i64} {
  func.func @_emb_ln_kernel(%arg0: i32, %arg1: i32, %arg2: memref<1x8x32xf32, #tpu.memory_space<vmem>>, %arg3: memref<1x8x32xf32, #tpu.memory_space<vmem>>, %arg4: memref<8x32xf32, #tpu.memory_space<vmem>>, %arg5: memref<1x32xf32, #tpu.memory_space<vmem>>, %arg6: memref<1x32xf32, #tpu.memory_space<vmem>>, %arg7: memref<1x8x32xbf16, #tpu.memory_space<vmem>>) attributes {dimension_semantics = [#tpu.dimension_semantics<parallel>, #tpu.dimension_semantics<parallel>], iteration_bounds = array<i64: 2, 1>, scalar_prefetch = 0 : i64, scratch_operands = 0 : i64, tpu.core_type = #tpu.core_type<tc>, window_params = [{transform_indices = @transform_0, window_bounds = array<i64: 1, 8, 32>}, {transform_indices = @transform_1, window_bounds = array<i64: 1, 8, 32>}, {transform_indices = @transform_2, window_bounds = array<i64: 8, 32>}, {pipeline_mode = #tpu.pipeline_mode<synchronous>, transform_indices = @transform_3, window_bounds = array<i64: 1, 32>}, {pipeline_mode = #tpu.pipeline_mode<synchronous>, transform_indices = @transform_4, window_bounds = array<i64: 1, 32>}, {transform_indices = @transform_5, window_bounds = array<i64: 1, 8, 32>}]} {
    %c0 = arith.constant 0 : index
    %c0_0 = arith.constant 0 : index
    %c0_1 = arith.constant 0 : index
    %0 = vector.load %arg2[%c0, %c0_0, %c0_1] : memref<1x8x32xf32, #tpu.memory_space<vmem>>, vector<1x8x32xf32>
    %1 = vector.shape_cast %0 : vector<1x8x32xf32> to vector<8x32xf32>
    %c0_2 = arith.constant 0 : index
    %c0_3 = arith.constant 0 : index
    %c0_4 = arith.constant 0 : index
    %2 = vector.load %arg3[%c0_2, %c0_3, %c0_4] : memref<1x8x32xf32, #tpu.memory_space<vmem>>, vector<1x8x32xf32>
    %3 = vector.shape_cast %2 : vector<1x8x32xf32> to vector<8x32xf32>
    %4 = arith.addf %1, %3 : vector<8x32xf32>
    %c0_5 = arith.constant 0 : index
    %c0_6 = arith.constant 0 : index
    %5 = vector.load %arg4[%c0_5, %c0_6] : memref<8x32xf32, #tpu.memory_space<vmem>>, vector<8x32xf32>
    %6 = arith.addf %4, %5 : vector<8x32xf32>
    %cst = arith.constant dense<0.000000e+00> : vector<8xf32>
    %7 = vector.multi_reduction <add>, %6, %cst [1] : vector<8x32xf32> to vector<8xf32>
    %8 = vector.shape_cast %7 : vector<8xf32> to vector<8x1xf32>
    %cst_7 = arith.constant 3.200000e+01 : f32
    %9 = vector.broadcast %cst_7 : f32 to vector<8x1xf32>
    %10 = arith.divf %8, %9 : vector<8x1xf32>
    %11 = vector.broadcast %10 : vector<8x1xf32> to vector<8x32xf32>
    %12 = arith.subf %6, %11 : vector<8x32xf32>
    %13 = vector.broadcast %10 : vector<8x1xf32> to vector<8x32xf32>
    %14 = arith.subf %6, %13 : vector<8x32xf32>
    %15 = arith.mulf %12, %14 : vector<8x32xf32>
    %cst_8 = arith.constant dense<0.000000e+00> : vector<8xf32>
    %16 = vector.multi_reduction <add>, %15, %cst_8 [1] : vector<8x32xf32> to vector<8xf32>
    %17 = vector.shape_cast %16 : vector<8xf32> to vector<8x1xf32>
    %cst_9 = arith.constant 3.200000e+01 : f32
    %18 = vector.broadcast %cst_9 : f32 to vector<8x1xf32>
    %19 = arith.divf %17, %18 : vector<8x1xf32>
    %20 = vector.broadcast %10 : vector<8x1xf32> to vector<8x32xf32>
    %21 = arith.subf %6, %20 : vector<8x32xf32>
    %cst_10 = arith.constant 9.99999996E-13 : f32
    %22 = vector.broadcast %cst_10 : f32 to vector<8x1xf32>
    %23 = arith.addf %19, %22 : vector<8x1xf32>
    %24 = math.rsqrt %23 : vector<8x1xf32>
    %25 = vector.broadcast %24 : vector<8x1xf32> to vector<8x32xf32>
    %26 = arith.mulf %21, %25 : vector<8x32xf32>
    %c0_11 = arith.constant 0 : index
    %c0_12 = arith.constant 0 : index
    %27 = vector.load %arg5[%c0_11, %c0_12] : memref<1x32xf32, #tpu.memory_space<vmem>>, vector<1x32xf32>
    %28 = vector.broadcast %27 : vector<1x32xf32> to vector<8x32xf32>
    %29 = arith.mulf %26, %28 : vector<8x32xf32>
    %c0_13 = arith.constant 0 : index
    %c0_14 = arith.constant 0 : index
    %30 = vector.load %arg6[%c0_13, %c0_14] : memref<1x32xf32, #tpu.memory_space<vmem>>, vector<1x32xf32>
    %31 = vector.broadcast %30 : vector<1x32xf32> to vector<8x32xf32>
    %32 = arith.addf %29, %31 : vector<8x32xf32>
    %33 = arith.truncf %32 : vector<8x32xf32> to vector<8x32xbf16>
    %c0_15 = arith.constant 0 : index
    %c0_16 = arith.constant 0 : index
    %c0_17 = arith.constant 0 : index
    %34 = vector.load %arg7[%c0_15, %c0_16, %c0_17] : memref<1x8x32xbf16, #tpu.memory_space<vmem>>, vector<1x8x32xbf16>
    %35 = vector.shape_cast %34 : vector<1x8x32xbf16> to vector<8x32xbf16>
    %36 = vector.shape_cast %33 : vector<8x32xbf16> to vector<1x8x32xbf16>
    tpu.vector_store %arg7[%c0_15, %c0_16, %c0_17], %36 {strides = array<i32>} : memref<1x8x32xbf16, #tpu.memory_space<vmem>>, vector<1x8x32xbf16>,
    return
  }
  func.func @transform_0(%arg0: i32, %arg1: i32) -> (i32, i32, i32) {
    %c0_i32 = arith.constant 0 : i32
    %c0_i32_0 = arith.constant 0 : i32
    return %arg0, %arg1, %c0_i32 : i32, i32, i32
  }
  func.func @transform_1(%arg0: i32, %arg1: i32) -> (i32, i32, i32) {
    %c0_i32 = arith.constant 0 : i32
    %c0_i32_0 = arith.constant 0 : i32
    return %arg0, %arg1, %c0_i32 : i32, i32, i32
  }
  func.func @transform_2(%arg0: i32, %arg1: i32) -> (i32, i32) {
    %c0_i32 = arith.constant 0 : i32
    %c0_i32_0 = arith.constant 0 : i32
    return %arg1, %c0_i32 : i32, i32
  }
  func.func @transform_3(%arg0: i32, %arg1: i32) -> (i32, i32) {
    %c0_i32 = arith.constant 0 : i32
    %c0_i32_0 = arith.constant 0 : i32
    %c0_i32_1 = arith.constant 0 : i32
    return %c0_i32, %c0_i32_0 : i32, i32
  }
  func.func @transform_4(%arg0: i32, %arg1: i32) -> (i32, i32) {
    %c0_i32 = arith.constant 0 : i32
    %c0_i32_0 = arith.constant 0 : i32
    %c0_i32_1 = arith.constant 0 : i32
    return %c0_i32, %c0_i32_0 : i32, i32
  }
  func.func @transform_5(%arg0: i32, %arg1: i32) -> (i32, i32, i32) {
    %c0_i32 = arith.constant 0 : i32
    %c0_i32_0 = arith.constant 0 : i32
    return %arg0, %arg1, %c0_i32 : i32, i32, i32
  }
}

module attributes {stable_mosaic.version = 11 : i64} {
  func.func @_flash_attn_kernel(%arg0: i32, %arg1: i32, %arg2: i32, %arg3: i32, %arg4: memref<1x1x8x8xbf16, #tpu.memory_space<vmem>>, %arg5: memref<1x1x8x8xbf16, #tpu.memory_space<vmem>>, %arg6: memref<1x1x8x8xbf16, #tpu.memory_space<vmem>>, %arg7: memref<1x1x8xf32, #tpu.memory_space<vmem>>, %arg8: memref<1x1x8x8xbf16, #tpu.memory_space<vmem>>, %arg9: memref<8x1xf32, #tpu.memory_space<vmem>>, %arg10: memref<8x1xf32, #tpu.memory_space<vmem>>, %arg11: memref<8x8xf32, #tpu.memory_space<vmem>>) attributes {dimension_semantics = [#tpu.dimension_semantics<parallel>, #tpu.dimension_semantics<parallel>, #tpu.dimension_semantics<parallel>, #tpu.dimension_semantics<arbitrary>], iteration_bounds = array<i64: 2, 4, 1, 1>, scalar_prefetch = 0 : i64, scratch_operands = 3 : i64, tpu.core_type = #tpu.core_type<tc>, window_params = [{transform_indices = @transform_0, window_bounds = array<i64: 1, 1, 8, 8>}, {transform_indices = @transform_1, window_bounds = array<i64: 1, 1, 8, 8>}, {transform_indices = @transform_2, window_bounds = array<i64: 1, 1, 8, 8>}, {transform_indices = @transform_3, window_bounds = array<i64: 1, 1, 8>}, {transform_indices = @transform_4, window_bounds = array<i64: 1, 1, 8, 8>}]} {
    %c0_i32 = arith.constant 0 : i32
    %0 = arith.cmpi eq, %arg3, %c0_i32 : i32
    %1 = arith.extui %0 : i1 to i32
    %c0_i32_0 = arith.constant 0 : i32
    %2 = arith.cmpi ne, %1, %c0_i32_0 : i32
    scf.if %2 {
      %cst_33 = arith.constant -1.000000e+30 : f32
      %42 = vector.broadcast %cst_33 : f32 to vector<8x1xf32>
      %c0_34 = arith.constant 0 : index
      %c0_35 = arith.constant 0 : index
      %43 = vector.load %arg9[%c0_34, %c0_35] : memref<8x1xf32, #tpu.memory_space<vmem>>, vector<8x1xf32>
      tpu.vector_store %arg9[%c0_34, %c0_35], %42 {strides = array<i32>} : memref<8x1xf32, #tpu.memory_space<vmem>>, vector<8x1xf32>,
      %cst_36 = arith.constant 0.000000e+00 : f32
      %44 = vector.broadcast %cst_36 : f32 to vector<8x1xf32>
      %c0_37 = arith.constant 0 : index
      %c0_38 = arith.constant 0 : index
      %45 = vector.load %arg10[%c0_37, %c0_38] : memref<8x1xf32, #tpu.memory_space<vmem>>, vector<8x1xf32>
      tpu.vector_store %arg10[%c0_37, %c0_38], %44 {strides = array<i32>} : memref<8x1xf32, #tpu.memory_space<vmem>>, vector<8x1xf32>,
      %cst_39 = arith.constant 0.000000e+00 : f32
      %46 = vector.broadcast %cst_39 : f32 to vector<8x8xf32>
      %c0_40 = arith.constant 0 : index
      %c0_41 = arith.constant 0 : index
      %47 = vector.load %arg11[%c0_40, %c0_41] : memref<8x8xf32, #tpu.memory_space<vmem>>, vector<8x8xf32>
      tpu.vector_store %arg11[%c0_40, %c0_41], %46 {strides = array<i32>} : memref<8x8xf32, #tpu.memory_space<vmem>>, vector<8x8xf32>,
    } else {
    }
    %c0 = arith.constant 0 : index
    %c0_1 = arith.constant 0 : index
    %c0_2 = arith.constant 0 : index
    %c0_3 = arith.constant 0 : index
    %3 = vector.load %arg4[%c0, %c0_1, %c0_2, %c0_3] : memref<1x1x8x8xbf16, #tpu.memory_space<vmem>>, vector<1x1x8x8xbf16>
    %4 = vector.shape_cast %3 : vector<1x1x8x8xbf16> to vector<8x8xbf16>
    %c0_4 = arith.constant 0 : index
    %c0_5 = arith.constant 0 : index
    %c0_6 = arith.constant 0 : index
    %c0_7 = arith.constant 0 : index
    %5 = vector.load %arg5[%c0_4, %c0_5, %c0_6, %c0_7] : memref<1x1x8x8xbf16, #tpu.memory_space<vmem>>, vector<1x1x8x8xbf16>
    %6 = vector.shape_cast %5 : vector<1x1x8x8xbf16> to vector<8x8xbf16>
    %c0_8 = arith.constant 0 : index
    %c0_9 = arith.constant 0 : index
    %c0_10 = arith.constant 0 : index
    %c0_11 = arith.constant 0 : index
    %7 = vector.load %arg6[%c0_8, %c0_9, %c0_10, %c0_11] : memref<1x1x8x8xbf16, #tpu.memory_space<vmem>>, vector<1x1x8x8xbf16>
    %8 = vector.shape_cast %7 : vector<1x1x8x8xbf16> to vector<8x8xbf16>
    %cst = arith.constant dense<0.000000e+00> : vector<8x8xf32>
    %9 = tpu.matmul %4, %6, %cst {dimension_numbers = #tpu.dot_dimension_numbers<[1], [1], [0], [0], [0, 0, 1, 0], [], []>} : vector<8x8xbf16>, vector<8x8xbf16>, vector<8x8xf32> -> vector<8x8xf32>
    %cst_12 = arith.constant 0.353553385 : f32
    %10 = vector.broadcast %cst_12 : f32 to vector<8x8xf32>
    %11 = arith.mulf %9, %10 : vector<8x8xf32>
    %c0_13 = arith.constant 0 : index
    %c0_14 = arith.constant 0 : index
    %c0_15 = arith.constant 0 : index
    %12 = vector.load %arg7[%c0_13, %c0_14, %c0_15] : memref<1x1x8xf32, #tpu.memory_space<vmem>>, vector<1x1x8xf32>
    %13 = vector.shape_cast %12 : vector<1x1x8xf32> to vector<1x8xf32>
    %14 = vector.broadcast %13 : vector<1x8xf32> to vector<8x8xf32>
    %15 = arith.addf %11, %14 : vector<8x8xf32>
    %c0_16 = arith.constant 0 : index
    %c0_17 = arith.constant 0 : index
    %16 = vector.load %arg9[%c0_16, %c0_17] : memref<8x1xf32, #tpu.memory_space<vmem>>, vector<8x1xf32>
    %cst_18 = arith.constant dense<0xFF800000> : vector<8xf32>
    %17 = vector.multi_reduction <maximumf>, %15, %cst_18 [1] : vector<8x8xf32> to vector<8xf32>
    %18 = vector.shape_cast %17 : vector<8xf32> to vector<8x1xf32>
    %19 = arith.maximumf %16, %18 : vector<8x1xf32>
    %20 = arith.subf %16, %19 : vector<8x1xf32>
    %21 = math.exp %20 : vector<8x1xf32>
    %22 = vector.broadcast %19 : vector<8x1xf32> to vector<8x8xf32>
    %23 = arith.subf %15, %22 : vector<8x8xf32>
    %24 = math.exp %23 : vector<8x8xf32>
    %c0_19 = arith.constant 0 : index
    %c0_20 = arith.constant 0 : index
    %25 = vector.load %arg10[%c0_19, %c0_20] : memref<8x1xf32, #tpu.memory_space<vmem>>, vector<8x1xf32>
    %26 = arith.mulf %21, %25 : vector<8x1xf32>
    %cst_21 = arith.constant dense<0.000000e+00> : vector<8xf32>
    %27 = vector.multi_reduction <add>, %24, %cst_21 [1] : vector<8x8xf32> to vector<8xf32>
    %28 = vector.shape_cast %27 : vector<8xf32> to vector<8x1xf32>
    %29 = arith.addf %26, %28 : vector<8x1xf32>
    %c0_22 = arith.constant 0 : index
    %c0_23 = arith.constant 0 : index
    %30 = vector.load %arg10[%c0_22, %c0_23] : memref<8x1xf32, #tpu.memory_space<vmem>>, vector<8x1xf32>
    tpu.vector_store %arg10[%c0_22, %c0_23], %29 {strides = array<i32>} : memref<8x1xf32, #tpu.memory_space<vmem>>, vector<8x1xf32>,
    %c0_24 = arith.constant 0 : index
    %c0_25 = arith.constant 0 : index
    %31 = vector.load %arg11[%c0_24, %c0_25] : memref<8x8xf32, #tpu.memory_space<vmem>>, vector<8x8xf32>
    %32 = vector.broadcast %21 : vector<8x1xf32> to vector<8x8xf32>
    %33 = arith.mulf %32, %31 : vector<8x8xf32>
    %34 = arith.truncf %24 : vector<8x8xf32> to vector<8x8xbf16>
    %cst_26 = arith.constant dense<0.000000e+00> : vector<8x8xf32>
    %35 = tpu.matmul %34, %8, %cst_26 {dimension_numbers = #tpu.dot_dimension_numbers<[1], [0], [0], [1], [0, 0, 1, 1], [], []>} : vector<8x8xbf16>, vector<8x8xbf16>, vector<8x8xf32> -> vector<8x8xf32>
    %36 = arith.addf %33, %35 : vector<8x8xf32>
    %c0_27 = arith.constant 0 : index
    %c0_28 = arith.constant 0 : index
    %37 = vector.load %arg11[%c0_27, %c0_28] : memref<8x8xf32, #tpu.memory_space<vmem>>, vector<8x8xf32>
    tpu.vector_store %arg11[%c0_27, %c0_28], %36 {strides = array<i32>} : memref<8x8xf32, #tpu.memory_space<vmem>>, vector<8x8xf32>,
    %c0_29 = arith.constant 0 : index
    %c0_30 = arith.constant 0 : index
    %38 = vector.load %arg9[%c0_29, %c0_30] : memref<8x1xf32, #tpu.memory_space<vmem>>, vector<8x1xf32>
    tpu.vector_store %arg9[%c0_29, %c0_30], %19 {strides = array<i32>} : memref<8x1xf32, #tpu.memory_space<vmem>>, vector<8x1xf32>,
    %c0_i32_31 = arith.constant 0 : i32
    %39 = arith.cmpi eq, %arg3, %c0_i32_31 : i32
    %40 = arith.extui %39 : i1 to i32
    %c0_i32_32 = arith.constant 0 : i32
    %41 = arith.cmpi ne, %40, %c0_i32_32 : i32
    scf.if %41 {
      %c0_33 = arith.constant 0 : index
      %c0_34 = arith.constant 0 : index
      %42 = vector.load %arg11[%c0_33, %c0_34] : memref<8x8xf32, #tpu.memory_space<vmem>>, vector<8x8xf32>
      %c0_35 = arith.constant 0 : index
      %c0_36 = arith.constant 0 : index
      %43 = vector.load %arg10[%c0_35, %c0_36] : memref<8x1xf32, #tpu.memory_space<vmem>>, vector<8x1xf32>
      %44 = tpu.reciprocal %43 {approx = true} : vector<8x1xf32> -> vector<8x1xf32>
      %45 = vector.broadcast %44 : vector<8x1xf32> to vector<8x8xf32>
      %46 = arith.mulf %42, %45 : vector<8x8xf32>
      %47 = arith.truncf %46 : vector<8x8xf32> to vector<8x8xbf16>
      %c0_37 = arith.constant 0 : index
      %c0_38 = arith.constant 0 : index
      %c0_39 = arith.constant 0 : index
      %c0_40 = arith.constant 0 : index
      %48 = vector.load %arg8[%c0_37, %c0_38, %c0_39, %c0_40] : memref<1x1x8x8xbf16, #tpu.memory_space<vmem>>, vector<1x1x8x8xbf16>
      %49 = vector.shape_cast %48 : vector<1x1x8x8xbf16> to vector<8x8xbf16>
      %50 = vector.shape_cast %47 : vector<8x8xbf16> to vector<1x1x8x8xbf16>
      tpu.vector_store %arg8[%c0_37, %c0_38, %c0_39, %c0_40], %50 {strides = array<i32>} : memref<1x1x8x8xbf16, #tpu.memory_space<vmem>>, vector<1x1x8x8xbf16>,
    } else {
    }
    return
  }
  func.func @transform_0(%arg0: i32, %arg1: i32, %arg2: i32, %arg3: i32) -> (i32, i32, i32, i32) {
    %c0_i32 = arith.constant 0 : i32
    %c0_i32_0 = arith.constant 0 : i32
    return %arg0, %arg1, %arg2, %c0_i32 : i32, i32, i32, i32
  }
  func.func @transform_1(%arg0: i32, %arg1: i32, %arg2: i32, %arg3: i32) -> (i32, i32, i32, i32) {
    %c0_i32 = arith.constant 0 : i32
    %c0_i32_0 = arith.constant 0 : i32
    return %arg0, %arg1, %arg3, %c0_i32 : i32, i32, i32, i32
  }
  func.func @transform_2(%arg0: i32, %arg1: i32, %arg2: i32, %arg3: i32) -> (i32, i32, i32, i32) {
    %c0_i32 = arith.constant 0 : i32
    %c0_i32_0 = arith.constant 0 : i32
    return %arg0, %arg1, %arg3, %c0_i32 : i32, i32, i32, i32
  }
  func.func @transform_3(%arg0: i32, %arg1: i32, %arg2: i32, %arg3: i32) -> (i32, i32, i32) {
    %c0_i32 = arith.constant 0 : i32
    %c0_i32_0 = arith.constant 0 : i32
    return %arg0, %c0_i32, %arg3 : i32, i32, i32
  }
  func.func @transform_4(%arg0: i32, %arg1: i32, %arg2: i32, %arg3: i32) -> (i32, i32, i32, i32) {
    %c0_i32 = arith.constant 0 : i32
    %c0_i32_0 = arith.constant 0 : i32
    return %arg0, %arg1, %arg2, %c0_i32 : i32, i32, i32, i32
  }
}

module attributes {stable_mosaic.version = 11 : i64} {
  func.func @_matmul_ln_kernel(%arg0: i32, %arg1: i32, %arg2: memref<16x32xbf16, #tpu.memory_space<vmem>>, %arg3: memref<32x32xbf16, #tpu.memory_space<vmem>>, %arg4: memref<1x32xf32, #tpu.memory_space<vmem>>, %arg5: memref<16x32xbf16, #tpu.memory_space<vmem>>, %arg6: memref<1x32xf32, #tpu.memory_space<vmem>>, %arg7: memref<1x32xf32, #tpu.memory_space<vmem>>, %arg8: memref<16x32xbf16, #tpu.memory_space<vmem>>, %arg9: memref<16x32xf32, #tpu.memory_space<vmem>>) attributes {dimension_semantics = [#tpu.dimension_semantics<parallel>, #tpu.dimension_semantics<arbitrary>], iteration_bounds = array<i64: 1, 1>, scalar_prefetch = 0 : i64, scratch_operands = 1 : i64, tpu.core_type = #tpu.core_type<tc>, window_params = [{transform_indices = @transform_0, window_bounds = array<i64: 16, 32>}, {transform_indices = @transform_1, window_bounds = array<i64: 32, 32>}, {pipeline_mode = #tpu.pipeline_mode<synchronous>, transform_indices = @transform_2, window_bounds = array<i64: 1, 32>}, {transform_indices = @transform_3, window_bounds = array<i64: 16, 32>}, {pipeline_mode = #tpu.pipeline_mode<synchronous>, transform_indices = @transform_4, window_bounds = array<i64: 1, 32>}, {pipeline_mode = #tpu.pipeline_mode<synchronous>, transform_indices = @transform_5, window_bounds = array<i64: 1, 32>}, {transform_indices = @transform_6, window_bounds = array<i64: 16, 32>}]} {
    %c0_i32 = arith.constant 0 : i32
    %0 = arith.cmpi eq, %arg1, %c0_i32 : i32
    %1 = arith.extui %0 : i1 to i32
    %c0_i32_0 = arith.constant 0 : i32
    %2 = arith.cmpi ne, %1, %c0_i32_0 : i32
    scf.if %2 {
      %cst_10 = arith.constant 0.000000e+00 : f32
      %12 = vector.broadcast %cst_10 : f32 to vector<16x32xf32>
      %c0_11 = arith.constant 0 : index
      %c0_12 = arith.constant 0 : index
      %13 = vector.load %arg9[%c0_11, %c0_12] : memref<16x32xf32, #tpu.memory_space<vmem>>, vector<16x32xf32>
      tpu.vector_store %arg9[%c0_11, %c0_12], %12 {strides = array<i32>} : memref<16x32xf32, #tpu.memory_space<vmem>>, vector<16x32xf32>,
    } else {
    }
    %c0 = arith.constant 0 : index
    %c0_1 = arith.constant 0 : index
    %3 = vector.load %arg9[%c0, %c0_1] : memref<16x32xf32, #tpu.memory_space<vmem>>, vector<16x32xf32>
    %c0_2 = arith.constant 0 : index
    %c0_3 = arith.constant 0 : index
    %4 = vector.load %arg2[%c0_2, %c0_3] : memref<16x32xbf16, #tpu.memory_space<vmem>>, vector<16x32xbf16>
    %c0_4 = arith.constant 0 : index
    %c0_5 = arith.constant 0 : index
    %5 = vector.load %arg3[%c0_4, %c0_5] : memref<32x32xbf16, #tpu.memory_space<vmem>>, vector<32x32xbf16>
    %cst = arith.constant dense<0.000000e+00> : vector<16x32xf32>
    %6 = tpu.matmul %4, %5, %cst {dimension_numbers = #tpu.dot_dimension_numbers<[1], [0], [0], [1], [0, 0, 1, 1], [], []>} : vector<16x32xbf16>, vector<32x32xbf16>, vector<16x32xf32> -> vector<16x32xf32>
    %7 = arith.addf %3, %6 : vector<16x32xf32>
    %c0_6 = arith.constant 0 : index
    %c0_7 = arith.constant 0 : index
    %8 = vector.load %arg9[%c0_6, %c0_7] : memref<16x32xf32, #tpu.memory_space<vmem>>, vector<16x32xf32>
    tpu.vector_store %arg9[%c0_6, %c0_7], %7 {strides = array<i32>} : memref<16x32xf32, #tpu.memory_space<vmem>>, vector<16x32xf32>,
    %c0_i32_8 = arith.constant 0 : i32
    %9 = arith.cmpi eq, %arg1, %c0_i32_8 : i32
    %10 = arith.extui %9 : i1 to i32
    %c0_i32_9 = arith.constant 0 : i32
    %11 = arith.cmpi ne, %10, %c0_i32_9 : i32
    scf.if %11 {
      %c0_10 = arith.constant 0 : index
      %c0_11 = arith.constant 0 : index
      %12 = vector.load %arg9[%c0_10, %c0_11] : memref<16x32xf32, #tpu.memory_space<vmem>>, vector<16x32xf32>
      %c0_12 = arith.constant 0 : index
      %c0_13 = arith.constant 0 : index
      %13 = vector.load %arg4[%c0_12, %c0_13] : memref<1x32xf32, #tpu.memory_space<vmem>>, vector<1x32xf32>
      %14 = vector.broadcast %13 : vector<1x32xf32> to vector<16x32xf32>
      %15 = arith.addf %12, %14 : vector<16x32xf32>
      %c0_14 = arith.constant 0 : index
      %c0_15 = arith.constant 0 : index
      %16 = vector.load %arg5[%c0_14, %c0_15] : memref<16x32xbf16, #tpu.memory_space<vmem>>, vector<16x32xbf16>
      %17 = arith.extf %16 : vector<16x32xbf16> to vector<16x32xf32>
      %18 = arith.addf %15, %17 : vector<16x32xf32>
      %cst_16 = arith.constant dense<0.000000e+00> : vector<16xf32>
      %19 = vector.multi_reduction <add>, %18, %cst_16 [1] : vector<16x32xf32> to vector<16xf32>
      %20 = vector.shape_cast %19 : vector<16xf32> to vector<16x1xf32>
      %cst_17 = arith.constant 3.200000e+01 : f32
      %21 = vector.broadcast %cst_17 : f32 to vector<16x1xf32>
      %22 = arith.divf %20, %21 : vector<16x1xf32>
      %23 = vector.broadcast %22 : vector<16x1xf32> to vector<16x32xf32>
      %24 = arith.subf %18, %23 : vector<16x32xf32>
      %25 = vector.broadcast %22 : vector<16x1xf32> to vector<16x32xf32>
      %26 = arith.subf %18, %25 : vector<16x32xf32>
      %27 = arith.mulf %24, %26 : vector<16x32xf32>
      %cst_18 = arith.constant dense<0.000000e+00> : vector<16xf32>
      %28 = vector.multi_reduction <add>, %27, %cst_18 [1] : vector<16x32xf32> to vector<16xf32>
      %29 = vector.shape_cast %28 : vector<16xf32> to vector<16x1xf32>
      %cst_19 = arith.constant 3.200000e+01 : f32
      %30 = vector.broadcast %cst_19 : f32 to vector<16x1xf32>
      %31 = arith.divf %29, %30 : vector<16x1xf32>
      %32 = vector.broadcast %22 : vector<16x1xf32> to vector<16x32xf32>
      %33 = arith.subf %18, %32 : vector<16x32xf32>
      %cst_20 = arith.constant 9.99999996E-13 : f32
      %34 = vector.broadcast %cst_20 : f32 to vector<16x1xf32>
      %35 = arith.addf %31, %34 : vector<16x1xf32>
      %36 = math.rsqrt %35 : vector<16x1xf32>
      %37 = vector.broadcast %36 : vector<16x1xf32> to vector<16x32xf32>
      %38 = arith.mulf %33, %37 : vector<16x32xf32>
      %c0_21 = arith.constant 0 : index
      %c0_22 = arith.constant 0 : index
      %39 = vector.load %arg6[%c0_21, %c0_22] : memref<1x32xf32, #tpu.memory_space<vmem>>, vector<1x32xf32>
      %40 = vector.broadcast %39 : vector<1x32xf32> to vector<16x32xf32>
      %41 = arith.mulf %38, %40 : vector<16x32xf32>
      %c0_23 = arith.constant 0 : index
      %c0_24 = arith.constant 0 : index
      %42 = vector.load %arg7[%c0_23, %c0_24] : memref<1x32xf32, #tpu.memory_space<vmem>>, vector<1x32xf32>
      %43 = vector.broadcast %42 : vector<1x32xf32> to vector<16x32xf32>
      %44 = arith.addf %41, %43 : vector<16x32xf32>
      %45 = arith.truncf %44 : vector<16x32xf32> to vector<16x32xbf16>
      %c0_25 = arith.constant 0 : index
      %c0_26 = arith.constant 0 : index
      %46 = vector.load %arg8[%c0_25, %c0_26] : memref<16x32xbf16, #tpu.memory_space<vmem>>, vector<16x32xbf16>
      tpu.vector_store %arg8[%c0_25, %c0_26], %45 {strides = array<i32>} : memref<16x32xbf16, #tpu.memory_space<vmem>>, vector<16x32xbf16>,
    } else {
    }
    return
  }
  func.func @transform_0(%arg0: i32, %arg1: i32) -> (i32, i32) {
    %c0_i32 = arith.constant 0 : i32
    return %arg0, %arg1 : i32, i32
  }
  func.func @transform_1(%arg0: i32, %arg1: i32) -> (i32, i32) {
    %c0_i32 = arith.constant 0 : i32
    %c0_i32_0 = arith.constant 0 : i32
    return %arg1, %c0_i32 : i32, i32
  }
  func.func @transform_2(%arg0: i32, %arg1: i32) -> (i32, i32) {
    %c0_i32 = arith.constant 0 : i32
    %c0_i32_0 = arith.constant 0 : i32
    %c0_i32_1 = arith.constant 0 : i32
    return %c0_i32, %c0_i32_0 : i32, i32
  }
  func.func @transform_3(%arg0: i32, %arg1: i32) -> (i32, i32) {
    %c0_i32 = arith.constant 0 : i32
    %c0_i32_0 = arith.constant 0 : i32
    return %arg0, %c0_i32 : i32, i32
  }
  func.func @transform_4(%arg0: i32, %arg1: i32) -> (i32, i32) {
    %c0_i32 = arith.constant 0 : i32
    %c0_i32_0 = arith.constant 0 : i32
    %c0_i32_1 = arith.constant 0 : i32
    return %c0_i32, %c0_i32_0 : i32, i32
  }
  func.func @transform_5(%arg0: i32, %arg1: i32) -> (i32, i32) {
    %c0_i32 = arith.constant 0 : i32
    %c0_i32_0 = arith.constant 0 : i32
    %c0_i32_1 = arith.constant 0 : i32
    return %c0_i32, %c0_i32_0 : i32, i32
  }
  func.func @transform_6(%arg0: i32, %arg1: i32) -> (i32, i32) {
    %c0_i32 = arith.constant 0 : i32
    %c0_i32_0 = arith.constant 0 : i32
    return %arg0, %c0_i32 : i32, i32
  }
}

module attributes {stable_mosaic.version = 11 : i64} {
  func.func @_matmul_kernel(%arg0: i32, %arg1: i32, %arg2: i32, %arg3: memref<16x32xbf16, #tpu.memory_space<vmem>>, %arg4: memref<32x64xbf16, #tpu.memory_space<vmem>>, %arg5: memref<1x64xf32, #tpu.memory_space<vmem>>, %arg6: memref<16x64xbf16, #tpu.memory_space<vmem>>, %arg7: memref<16x64xf32, #tpu.memory_space<vmem>>) attributes {dimension_semantics = [#tpu.dimension_semantics<parallel>, #tpu.dimension_semantics<parallel>, #tpu.dimension_semantics<arbitrary>], iteration_bounds = array<i64: 1, 1, 1>, scalar_prefetch = 0 : i64, scratch_operands = 1 : i64, tpu.core_type = #tpu.core_type<tc>, window_params = [{transform_indices = @transform_0, window_bounds = array<i64: 16, 32>}, {transform_indices = @transform_1, window_bounds = array<i64: 32, 64>}, {transform_indices = @transform_2, window_bounds = array<i64: 1, 64>}, {transform_indices = @transform_3, window_bounds = array<i64: 16, 64>}]} {
    %c0_i32 = arith.constant 0 : i32
    %0 = arith.cmpi eq, %arg2, %c0_i32 : i32
    %1 = arith.extui %0 : i1 to i32
    %c0_i32_0 = arith.constant 0 : i32
    %2 = arith.cmpi ne, %1, %c0_i32_0 : i32
    scf.if %2 {
      %cst_10 = arith.constant 0.000000e+00 : f32
      %12 = vector.broadcast %cst_10 : f32 to vector<16x64xf32>
      %c0_11 = arith.constant 0 : index
      %c0_12 = arith.constant 0 : index
      %13 = vector.load %arg7[%c0_11, %c0_12] : memref<16x64xf32, #tpu.memory_space<vmem>>, vector<16x64xf32>
      tpu.vector_store %arg7[%c0_11, %c0_12], %12 {strides = array<i32>} : memref<16x64xf32, #tpu.memory_space<vmem>>, vector<16x64xf32>,
    } else {
    }
    %c0 = arith.constant 0 : index
    %c0_1 = arith.constant 0 : index
    %3 = vector.load %arg7[%c0, %c0_1] : memref<16x64xf32, #tpu.memory_space<vmem>>, vector<16x64xf32>
    %c0_2 = arith.constant 0 : index
    %c0_3 = arith.constant 0 : index
    %4 = vector.load %arg3[%c0_2, %c0_3] : memref<16x32xbf16, #tpu.memory_space<vmem>>, vector<16x32xbf16>
    %c0_4 = arith.constant 0 : index
    %c0_5 = arith.constant 0 : index
    %5 = vector.load %arg4[%c0_4, %c0_5] : memref<32x64xbf16, #tpu.memory_space<vmem>>, vector<32x64xbf16>
    %cst = arith.constant dense<0.000000e+00> : vector<16x64xf32>
    %6 = tpu.matmul %4, %5, %cst {dimension_numbers = #tpu.dot_dimension_numbers<[1], [0], [0], [1], [0, 0, 1, 1], [], []>} : vector<16x32xbf16>, vector<32x64xbf16>, vector<16x64xf32> -> vector<16x64xf32>
    %7 = arith.addf %3, %6 : vector<16x64xf32>
    %c0_6 = arith.constant 0 : index
    %c0_7 = arith.constant 0 : index
    %8 = vector.load %arg7[%c0_6, %c0_7] : memref<16x64xf32, #tpu.memory_space<vmem>>, vector<16x64xf32>
    tpu.vector_store %arg7[%c0_6, %c0_7], %7 {strides = array<i32>} : memref<16x64xf32, #tpu.memory_space<vmem>>, vector<16x64xf32>,
    %c0_i32_8 = arith.constant 0 : i32
    %9 = arith.cmpi eq, %arg2, %c0_i32_8 : i32
    %10 = arith.extui %9 : i1 to i32
    %c0_i32_9 = arith.constant 0 : i32
    %11 = arith.cmpi ne, %10, %c0_i32_9 : i32
    scf.if %11 {
      %c0_10 = arith.constant 0 : index
      %c0_11 = arith.constant 0 : index
      %12 = vector.load %arg7[%c0_10, %c0_11] : memref<16x64xf32, #tpu.memory_space<vmem>>, vector<16x64xf32>
      %c0_12 = arith.constant 0 : index
      %c0_13 = arith.constant 0 : index
      %13 = vector.load %arg5[%c0_12, %c0_13] : memref<1x64xf32, #tpu.memory_space<vmem>>, vector<1x64xf32>
      %14 = vector.broadcast %13 : vector<1x64xf32> to vector<16x64xf32>
      %15 = arith.addf %12, %14 : vector<16x64xf32>
      %cst_14 = arith.constant 5.000000e-01 : f32
      %16 = vector.broadcast %cst_14 : f32 to vector<16x64xf32>
      %17 = arith.mulf %16, %15 : vector<16x64xf32>
      %cst_15 = arith.constant 4.471500e-02 : f32
      %18 = vector.broadcast %cst_15 : f32 to vector<16x64xf32>
      %19 = arith.mulf %18, %15 : vector<16x64xf32>
      %20 = arith.mulf %19, %15 : vector<16x64xf32>
      %21 = arith.mulf %20, %15 : vector<16x64xf32>
      %22 = arith.addf %15, %21 : vector<16x64xf32>
      %cst_16 = arith.constant 0.797884583 : f32
      %23 = vector.broadcast %cst_16 : f32 to vector<16x64xf32>
      %24 = arith.mulf %23, %22 : vector<16x64xf32>
      %25 = math.tanh %24 : vector<16x64xf32>
      %cst_17 = arith.constant 1.000000e+00 : f32
      %26 = vector.broadcast %cst_17 : f32 to vector<16x64xf32>
      %27 = arith.addf %26, %25 : vector<16x64xf32>
      %28 = arith.mulf %17, %27 : vector<16x64xf32>
      %29 = arith.truncf %28 : vector<16x64xf32> to vector<16x64xbf16>
      %c0_18 = arith.constant 0 : index
      %c0_19 = arith.constant 0 : index
      %30 = vector.load %arg6[%c0_18, %c0_19] : memref<16x64xbf16, #tpu.memory_space<vmem>>, vector<16x64xbf16>
      tpu.vector_store %arg6[%c0_18, %c0_19], %29 {strides = array<i32>} : memref<16x64xbf16, #tpu.memory_space<vmem>>, vector<16x64xbf16>,
    } else {
    }
    return
  }
  func.func @transform_0(%arg0: i32, %arg1: i32, %arg2: i32) -> (i32, i32) {
    %c0_i32 = arith.constant 0 : i32
    return %arg0, %arg2 : i32, i32
  }
  func.func @transform_1(%arg0: i32, %arg1: i32, %arg2: i32) -> (i32, i32) {
    %c0_i32 = arith.constant 0 : i32
    return %arg2, %arg1 : i32, i32
  }
  func.func @transform_2(%arg0: i32, %arg1: i32, %arg2: i32) -> (i32, i32) {
    %c0_i32 = arith.constant 0 : i32
    %c0_i32_0 = arith.constant 0 : i32
    return %c0_i32, %arg1 : i32, i32
  }
  func.func @transform_3(%arg0: i32, %arg1: i32, %arg2: i32) -> (i32, i32) {
    %c0_i32 = arith.constant 0 : i32
    return %arg0, %arg1 : i32, i32
  }
}

module attributes {stable_mosaic.version = 11 : i64} {
  func.func @_matmul_ln_kernel(%arg0: i32, %arg1: i32, %arg2: memref<16x64xbf16, #tpu.memory_space<vmem>>, %arg3: memref<64x32xbf16, #tpu.memory_space<vmem>>, %arg4: memref<1x32xf32, #tpu.memory_space<vmem>>, %arg5: memref<16x32xbf16, #tpu.memory_space<vmem>>, %arg6: memref<1x32xf32, #tpu.memory_space<vmem>>, %arg7: memref<1x32xf32, #tpu.memory_space<vmem>>, %arg8: memref<16x32xbf16, #tpu.memory_space<vmem>>, %arg9: memref<16x32xf32, #tpu.memory_space<vmem>>) attributes {dimension_semantics = [#tpu.dimension_semantics<parallel>, #tpu.dimension_semantics<arbitrary>], iteration_bounds = array<i64: 1, 1>, scalar_prefetch = 0 : i64, scratch_operands = 1 : i64, tpu.core_type = #tpu.core_type<tc>, window_params = [{transform_indices = @transform_0, window_bounds = array<i64: 16, 64>}, {transform_indices = @transform_1, window_bounds = array<i64: 64, 32>}, {pipeline_mode = #tpu.pipeline_mode<synchronous>, transform_indices = @transform_2, window_bounds = array<i64: 1, 32>}, {transform_indices = @transform_3, window_bounds = array<i64: 16, 32>}, {pipeline_mode = #tpu.pipeline_mode<synchronous>, transform_indices = @transform_4, window_bounds = array<i64: 1, 32>}, {pipeline_mode = #tpu.pipeline_mode<synchronous>, transform_indices = @transform_5, window_bounds = array<i64: 1, 32>}, {transform_indices = @transform_6, window_bounds = array<i64: 16, 32>}]} {
    %c0_i32 = arith.constant 0 : i32
    %0 = arith.cmpi eq, %arg1, %c0_i32 : i32
    %1 = arith.extui %0 : i1 to i32
    %c0_i32_0 = arith.constant 0 : i32
    %2 = arith.cmpi ne, %1, %c0_i32_0 : i32
    scf.if %2 {
      %cst_10 = arith.constant 0.000000e+00 : f32
      %12 = vector.broadcast %cst_10 : f32 to vector<16x32xf32>
      %c0_11 = arith.constant 0 : index
      %c0_12 = arith.constant 0 : index
      %13 = vector.load %arg9[%c0_11, %c0_12] : memref<16x32xf32, #tpu.memory_space<vmem>>, vector<16x32xf32>
      tpu.vector_store %arg9[%c0_11, %c0_12], %12 {strides = array<i32>} : memref<16x32xf32, #tpu.memory_space<vmem>>, vector<16x32xf32>,
    } else {
    }
    %c0 = arith.constant 0 : index
    %c0_1 = arith.constant 0 : index
    %3 = vector.load %arg9[%c0, %c0_1] : memref<16x32xf32, #tpu.memory_space<vmem>>, vector<16x32xf32>
    %c0_2 = arith.constant 0 : index
    %c0_3 = arith.constant 0 : index
    %4 = vector.load %arg2[%c0_2, %c0_3] : memref<16x64xbf16, #tpu.memory_space<vmem>>, vector<16x64xbf16>
    %c0_4 = arith.constant 0 : index
    %c0_5 = arith.constant 0 : index
    %5 = vector.load %arg3[%c0_4, %c0_5] : memref<64x32xbf16, #tpu.memory_space<vmem>>, vector<64x32xbf16>
    %cst = arith.constant dense<0.000000e+00> : vector<16x32xf32>
    %6 = tpu.matmul %4, %5, %cst {dimension_numbers = #tpu.dot_dimension_numbers<[1], [0], [0], [1], [0, 0, 1, 1], [], []>} : vector<16x64xbf16>, vector<64x32xbf16>, vector<16x32xf32> -> vector<16x32xf32>
    %7 = arith.addf %3, %6 : vector<16x32xf32>
    %c0_6 = arith.constant 0 : index
    %c0_7 = arith.constant 0 : index
    %8 = vector.load %arg9[%c0_6, %c0_7] : memref<16x32xf32, #tpu.memory_space<vmem>>, vector<16x32xf32>
    tpu.vector_store %arg9[%c0_6, %c0_7], %7 {strides = array<i32>} : memref<16x32xf32, #tpu.memory_space<vmem>>, vector<16x32xf32>,
    %c0_i32_8 = arith.constant 0 : i32
    %9 = arith.cmpi eq, %arg1, %c0_i32_8 : i32
    %10 = arith.extui %9 : i1 to i32
    %c0_i32_9 = arith.constant 0 : i32
    %11 = arith.cmpi ne, %10, %c0_i32_9 : i32
    scf.if %11 {
      %c0_10 = arith.constant 0 : index
      %c0_11 = arith.constant 0 : index
      %12 = vector.load %arg9[%c0_10, %c0_11] : memref<16x32xf32, #tpu.memory_space<vmem>>, vector<16x32xf32>
      %c0_12 = arith.constant 0 : index
      %c0_13 = arith.constant 0 : index
      %13 = vector.load %arg4[%c0_12, %c0_13] : memref<1x32xf32, #tpu.memory_space<vmem>>, vector<1x32xf32>
      %14 = vector.broadcast %13 : vector<1x32xf32> to vector<16x32xf32>
      %15 = arith.addf %12, %14 : vector<16x32xf32>
      %c0_14 = arith.constant 0 : index
      %c0_15 = arith.constant 0 : index
      %16 = vector.load %arg5[%c0_14, %c0_15] : memref<16x32xbf16, #tpu.memory_space<vmem>>, vector<16x32xbf16>
      %17 = arith.extf %16 : vector<16x32xbf16> to vector<16x32xf32>
      %18 = arith.addf %15, %17 : vector<16x32xf32>
      %cst_16 = arith.constant dense<0.000000e+00> : vector<16xf32>
      %19 = vector.multi_reduction <add>, %18, %cst_16 [1] : vector<16x32xf32> to vector<16xf32>
      %20 = vector.shape_cast %19 : vector<16xf32> to vector<16x1xf32>
      %cst_17 = arith.constant 3.200000e+01 : f32
      %21 = vector.broadcast %cst_17 : f32 to vector<16x1xf32>
      %22 = arith.divf %20, %21 : vector<16x1xf32>
      %23 = vector.broadcast %22 : vector<16x1xf32> to vector<16x32xf32>
      %24 = arith.subf %18, %23 : vector<16x32xf32>
      %25 = vector.broadcast %22 : vector<16x1xf32> to vector<16x32xf32>
      %26 = arith.subf %18, %25 : vector<16x32xf32>
      %27 = arith.mulf %24, %26 : vector<16x32xf32>
      %cst_18 = arith.constant dense<0.000000e+00> : vector<16xf32>
      %28 = vector.multi_reduction <add>, %27, %cst_18 [1] : vector<16x32xf32> to vector<16xf32>
      %29 = vector.shape_cast %28 : vector<16xf32> to vector<16x1xf32>
      %cst_19 = arith.constant 3.200000e+01 : f32
      %30 = vector.broadcast %cst_19 : f32 to vector<16x1xf32>
      %31 = arith.divf %29, %30 : vector<16x1xf32>
      %32 = vector.broadcast %22 : vector<16x1xf32> to vector<16x32xf32>
      %33 = arith.subf %18, %32 : vector<16x32xf32>
      %cst_20 = arith.constant 9.99999996E-13 : f32
      %34 = vector.broadcast %cst_20 : f32 to vector<16x1xf32>
      %35 = arith.addf %31, %34 : vector<16x1xf32>
      %36 = math.rsqrt %35 : vector<16x1xf32>
      %37 = vector.broadcast %36 : vector<16x1xf32> to vector<16x32xf32>
      %38 = arith.mulf %33, %37 : vector<16x32xf32>
      %c0_21 = arith.constant 0 : index
      %c0_22 = arith.constant 0 : index
      %39 = vector.load %arg6[%c0_21, %c0_22] : memref<1x32xf32, #tpu.memory_space<vmem>>, vector<1x32xf32>
      %40 = vector.broadcast %39 : vector<1x32xf32> to vector<16x32xf32>
      %41 = arith.mulf %38, %40 : vector<16x32xf32>
      %c0_23 = arith.constant 0 : index
      %c0_24 = arith.constant 0 : index
      %42 = vector.load %arg7[%c0_23, %c0_24] : memref<1x32xf32, #tpu.memory_space<vmem>>, vector<1x32xf32>
      %43 = vector.broadcast %42 : vector<1x32xf32> to vector<16x32xf32>
      %44 = arith.addf %41, %43 : vector<16x32xf32>
      %45 = arith.truncf %44 : vector<16x32xf32> to vector<16x32xbf16>
      %c0_25 = arith.constant 0 : index
      %c0_26 = arith.constant 0 : index
      %46 = vector.load %arg8[%c0_25, %c0_26] : memref<16x32xbf16, #tpu.memory_space<vmem>>, vector<16x32xbf16>
      tpu.vector_store %arg8[%c0_25, %c0_26], %45 {strides = array<i32>} : memref<16x32xbf16, #tpu.memory_space<vmem>>, vector<16x32xbf16>,
    } else {
    }
    return
  }
  func.func @transform_0(%arg0: i32, %arg1: i32) -> (i32, i32) {
    %c0_i32 = arith.constant 0 : i32
    return %arg0, %arg1 : i32, i32
  }
  func.func @transform_1(%arg0: i32, %arg1: i32) -> (i32, i32) {
    %c0_i32 = arith.constant 0 : i32
    %c0_i32_0 = arith.constant 0 : i32
    return %arg1, %c0_i32 : i32, i32
  }
  func.func @transform_2(%arg0: i32, %arg1: i32) -> (i32, i32) {
    %c0_i32 = arith.constant 0 : i32
    %c0_i32_0 = arith.constant 0 : i32
    %c0_i32_1 = arith.constant 0 : i32
    return %c0_i32, %c0_i32_0 : i32, i32
  }
  func.func @transform_3(%arg0: i32, %arg1: i32) -> (i32, i32) {
    %c0_i32 = arith.constant 0 : i32
    %c0_i32_0 = arith.constant 0 : i32
    return %arg0, %c0_i32 : i32, i32
  }
  func.func @transform_4(%arg0: i32, %arg1: i32) -> (i32, i32) {
    %c0_i32 = arith.constant 0 : i32
    %c0_i32_0 = arith.constant 0 : i32
    %c0_i32_1 = arith.constant 0 : i32
    return %c0_i32, %c0_i32_0 : i32, i32
  }
  func.func @transform_5(%arg0: i32, %arg1: i32) -> (i32, i32) {
    %c0_i32 = arith.constant 0 : i32
    %c0_i32_0 = arith.constant 0 : i32
    %c0_i32_1 = arith.constant 0 : i32
    return %c0_i32, %c0_i32_0 : i32, i32
  }
  func.func @transform_6(%arg0: i32, %arg1: i32) -> (i32, i32) {
    %c0_i32 = arith.constant 0 : i32
    %c0_i32_0 = arith.constant 0 : i32
    return %arg0, %c0_i32 : i32, i32
  }
}

</mosaic_0001>

<llo_original>
// kernel: _lambda_.12
$region0: #{_lambda_.12}
  #allocation0 [shape = 'u32[]', space=smem, size = 0x4, offset = 0x4, fixed_abs, tag = 'smem constant byte address 0x4 - core index']
  #allocation1 [shape = 'u32[72,128]{1,0:T(1,128)}', space=vmem, size = 0x9000, scoped, tag = 'internal scratch']
  #allocation2 [shape = 'f32[16,96]{1,0:T(8,128)}', space=vmem, size = 0x2000, scoped, tag = 'scratch operand']
  %s0 = inlined_call_operand.vmem [shape: bf16[16,32], index: 0, kind: input, shape index: {}]
  %s1 = inlined_call_operand.vmem [shape: bf16[32,96], index: 1, kind: input, shape index: {}]
  %s2 = inlined_call_operand.vmem [shape: f32[1,96], index: 2, kind: input, shape index: {}]
  %s3 = inlined_call_operand.vmem [shape: bf16[16,96], index: 3, kind: output, shape index: {}]
  %s4 = sld [smem:[#allocation0]]
  $region30: #{_lambda_.12} parent=0
    _
  %s6 = ssub.s32 1, %s4
  %s7 = scalar_select 0, %s6, %s4
  // Predicated region
  $region2: #{_lambda_.12} parent=0 // pred_check
    _
  $region3: #{_lambda_.12} parent=0 // pred_check_branch
    %9 = sbr.rel (0) target = $region5
  $region4: #{_lambda_.12} parent=0 // pred_region
    _
  $region5: #{_lambda_.12} parent=0 // pred_fallthru
    _
  // Predicated region
  $region6: #{_lambda_.12} parent=0 // pred_check
    _
  $region7: #{_lambda_.12} parent=0 // pred_check_branch
    %11 = sbr.rel (0) target = $region9
  $region8: #{_lambda_.12} parent=0 // pred_region
    _
  $region9: #{_lambda_.12} parent=0 // pred_fallthru
    _
  // Predicated region
  $region10: #{_lambda_.12} parent=0 // pred_check
    _
  $region11: #{_lambda_.12} parent=0 // pred_check_branch
    %13 = sbr.rel (0) target = $region13
  $region12: #{_lambda_.12} parent=0 // pred_region
    _
  $region13: #{_lambda_.12} parent=0 // pred_fallthru
    _
  %p15 = scmp.eq.s32.totalorder 0, 0
  // Predicated region
  $region14: #{_lambda_.12} parent=0 // pred_check
    %p16 = pneg %p15
  $region15: #{_lambda_.12} parent=0 // pred_check_branch
    %18 = sbr.rel (%p16) target = $region17
  $region16: #{_lambda_.12} parent=0 // pred_region
    %vm19 = vcmask 785408
    %20 = vst.msk [vmem:[#allocation2] sm:$0xff] %vm19, 0.0
    %21 = vst.msk [vmem:[#allocation2 + $0x8] sm:$0xff] %vm19, 0.0
  $region17: #{_lambda_.12} parent=0 // pred_fallthru
    _
  %v22 = vld [vmem:[#allocation2] sm:$0xff]
  %v23 = vld [vmem:[#allocation2 + $0x8] sm:$0xff]
  %v24 = vld [vmem:[%s0] sm:$0xf]
  %v25 = vld [vmem:[%s0 + $0x4] sm:$0xf]
  %v26 = vld [vmem:[%s1] sm:$0xf]
  %v27 = vld [vmem:[%s1 + $0x4] sm:$0xf]
  %v28 = vld [vmem:[%s1 + $0x8] sm:$0xf]
  %v29 = vld [vmem:[%s1 + $0xc] sm:$0xf]
  %v32 = vunpack.c.l.b16 %v24
  %v33 = vunpack.c.l.b16 %v25
  %v34 = vpack.c.b16 %v33, %v32
  %v39 = vunpack.c.l.b16 %v26
  %v40 = vunpack.c.l.b16 %v27
  %v41 = vunpack.c.l.b16 %v28
  %v42 = vunpack.c.l.b16 %v29
  %v43 = vpack.c.b16 %v40, %v39
  %v44 = vpack.c.b16 %v42, %v41
  %vm47 = vcmask 261120
  %v49 = vsel %vm47, %v34, 0
  %51 = vmatpush.bf16.msra.mxu0 0
  %52 = vmatpush.bf16.msra.mxu0 0
  %53 = vmatpush.bf16.msra.mxu0 0
  %54 = vmatpush.bf16.msra.mxu0 0
  %55 = vmatpush.bf16.msra.mxu0 0
  %56 = vmatpush.bf16.msra.mxu0 0
  %57 = vmatpush.bf16.msra.mxu0 %v44
  %58 = vmatpush.bf16.msra.mxu0 %v43
  %59 = vmatmul.bf16.gmra.mxu0 %v49
  %v60 = vpop.f32.mrf.mxu0
  %v61 = vadd.f32 0.0, %v60
  %v62 = vpop.f32.mrf.mxu0
  %v63 = vadd.f32 0.0, %v62
  %64 = vdwg.mxu0
  %v65 = vadd.f32 %v22, %v61
  %v66 = vadd.f32 %v23, %v63
  %vm67 = vcmask 785408
  %68 = vst.msk [vmem:[#allocation2] sm:$0xff] %vm67, %v65
  %69 = vst.msk [vmem:[#allocation2 + $0x8] sm:$0xff] %vm67, %v66
  // Predicated region
  $region18: #{_lambda_.12} parent=0 // pred_check
    %p70 = pneg %p15
  $region19: #{_lambda_.12} parent=0 // pred_check_branch
    %72 = sbr.rel (%p70) target = $region21
  $region20: #{_lambda_.12} parent=0 // pred_region
    %v73 = vld [vmem:[#allocation2] sm:$0xff]
    %v74 = vld [vmem:[#allocation2 + $0x8] sm:$0xff]
    %v75 = vld [vmem:[%s2] sm:$0x1]
    %v77 = vperm.slane %v75, 0
    %v79 = vadd.f32 %v73, %v77
    %v80 = vadd.f32 %v74, %v77
    %v81 = vpack.c.bf16 %v79, %v79
    %v82 = vpack.c.bf16 %v80, %v80
    %vm83 = vcmask 781312
    %84 = vst.msk [vmem:[%s3] sm:$0xf] %vm83, %v81
    %85 = vst.msk [vmem:[%s3 + $0x4] sm:$0xf] %vm83, %v82
  $region21: #{_lambda_.12} parent=0 // pred_fallthru
    _
  // Predicated region
  $region22: #{_lambda_.12} parent=0 // pred_check
    _
  $region23: #{_lambda_.12} parent=0 // pred_check_branch
    %87 = sbr.rel (0) target = $region25
  $region24: #{_lambda_.12} parent=0 // pred_region
    _
  $region25: #{_lambda_.12} parent=0 // pred_fallthru
    _
  // Predicated region
  $region26: #{_lambda_.12} parent=0 // pred_check
    _
  $region27: #{_lambda_.12} parent=0 // pred_check_branch
    %89 = sbr.rel (0) target = $region29
  $region28: #{_lambda_.12} parent=0 // pred_region
    _
  $region29: #{_lambda_.12} parent=0 // pred_fallthru
    _

// kernel: _lambda_.11
$region0: #{_lambda_.11}
  #allocation0 [shape = 'u32[]', space=smem, size = 0x4, offset = 0x4, fixed_abs, tag = 'smem constant byte address 0x4 - core index']
  #allocation1 [shape = 'u32[72,128]{1,0:T(1,128)}', space=vmem, size = 0x9000, scoped, tag = 'internal scratch']
  %s0 = inlined_call_operand.vmem [shape: f32[2,8,32], index: 0, kind: input, shape index: {}]
  %s1 = inlined_call_operand.vmem [shape: f32[2,8,32], index: 1, kind: input, shape index: {}]
  %s2 = inlined_call_operand.vmem [shape: f32[8,32], index: 2, kind: input, shape index: {}]
  %s3 = inlined_call_operand.vmem [shape: f32[1,32], index: 3, kind: input, shape index: {}]
  %s4 = inlined_call_operand.vmem [shape: f32[1,32], index: 4, kind: input, shape index: {}]
  %s5 = inlined_call_operand.vmem [shape: bf16[2,8,32], index: 5, kind: output, shape index: {}]
  %s6 = sld [smem:[#allocation0]]
  $region53: #{_lambda_.11} parent=0
    _
  %s8 = ssub.s32 1, %s6
  %s9 = scalar_select 0, %s8, %s6
  loop: start=0, step=1, limit=4
  $region2: #{_lambda_.11} parent=0 // loop_pre_header
    _
  $region3: #{_lambda_.11} parent=0 // loop_header
    %s11 = sphi 0, %s15
    %p12 = scmp.ge.s32.totalorder %s11, 4
    %s18 = sphi 0, %s30
    %s19 = sphi 0, %s26
    %s20 = sphi 0, %s18
    %s21 = sphi 0, %s19
    %s22 = sphi 0, %s20
    %s23 = sphi 0, %s21
    %s35 = sphi 0, %s37
    %s38 = sphi 0, %s35
    %s39 = sphi 0, %s38
    %s55 = sphi 0, %s39
    %s63 = sphi 0, %s65
    %s66 = sphi 0, %s63
    %s67 = sphi 0, %s66
    %s83 = sphi 0, %s67
    %s89 = sphi 0, %s91
    %s92 = sphi 0, %s89
    %s93 = sphi 0, %s92
    %s109 = sphi 0, %s93
    %s113 = sphi 0, %s113
    %s115 = sphi 0, %s113
    %s116 = sphi 0, %s115
    %s130 = sphi 0, %s116
    %s134 = sphi 0, %s134
    %s136 = sphi 0, %s134
    %s137 = sphi 0, %s136
    %s151 = sphi 0, %s137
    %s159 = sphi 0, %s161
    %s162 = sphi 0, %s159
    %s163 = sphi 0, %s162
    %s179 = sphi 0, %s163
  $region4: #{_lambda_.11} parent=0 // loop_header_branch
    %14 = sbr.rel (%p12) target = $region8
  $region5: #{_lambda_.11} parent=0 // loop_body
    %s16 = ssub.s32 %s11, 1
    %s17 = ssub.s32 %s11, 2
    %s24 = sadd.s32 1, %s19
    %p25 = scmp.ge.s32.totalorder %s24, 1
    %s26 = scalar_select %p25, 0, %s24
    %s27 = sadd.s32 1, %s18
    %s28 = scalar_select %p25, %s27, %s18
    %p29 = scmp.ge.s32.totalorder %s28, 2
    %s30 = scalar_select %p29, 0, %s28
    %s31 = ssub.s32 %s18, %s30
    %s32 = ssub.s32 %s19, %s26
    %s33 = sor.u32 %s31, %s32
    %p34 = scmp.eq.s32.totalorder %s33, 0
    %s36 = sadd.s32 %s35, 1
    %s37 = scalar_select %p34, %s35, %s36
    %p40 = pneg %p34
    %p41 = scmp.eq.s32.totalorder %s11, 1
    %p42 = por %p40, %p41
    %p43 = scmp.ne.s32.totalorder %s35, %s38
    %p44 = scmp.eq.s32.totalorder %s11, 0
    %p45 = por %p43, %p44
    %p46 = scmp.ne.s32.totalorder %s35, %s38
    %p47 = scmp.eq.s32.totalorder %s16, 1
    %p48 = por %p46, %p47
    %p49 = scmp.ne.s32.totalorder %s38, %s39
    %p50 = scmp.eq.s32.totalorder %s16, 0
    %p51 = por %p49, %p50
    %p52 = scmp.ne.s32.totalorder %s38, %s39
    %p53 = scmp.eq.s32.totalorder %s17, 1
    %p54 = por %p52, %p53
    %p56 = scmp.ne.s32.totalorder %s39, %s55
    %p57 = scmp.eq.s32.totalorder %s17, 0
    %p58 = por %p56, %p57
    %s59 = ssub.s32 %s18, %s30
    %s60 = ssub.s32 %s19, %s26
    %s61 = sor.u32 %s59, %s60
    %p62 = scmp.eq.s32.totalorder %s61, 0
    %s64 = sadd.s32 %s63, 1
    %s65 = scalar_select %p62, %s63, %s64
    %p68 = pneg %p62
    %p69 = scmp.eq.s32.totalorder %s11, 1
    %p70 = por %p68, %p69
    %p71 = scmp.ne.s32.totalorder %s63, %s66
    %p72 = scmp.eq.s32.totalorder %s11, 0
    %p73 = por %p71, %p72
    %p74 = scmp.ne.s32.totalorder %s63, %s66
    %p75 = scmp.eq.s32.totalorder %s16, 1
    %p76 = por %p74, %p75
    %p77 = scmp.ne.s32.totalorder %s66, %s67
    %p78 = scmp.eq.s32.totalorder %s16, 0
    %p79 = por %p77, %p78
    %p80 = scmp.ne.s32.totalorder %s66, %s67
    %p81 = scmp.eq.s32.totalorder %s17, 1
    %p82 = por %p80, %p81
    %p84 = scmp.ne.s32.totalorder %s67, %s83
    %p85 = scmp.eq.s32.totalorder %s17, 0
    %p86 = por %p84, %p85
    %s87 = ssub.s32 %s19, %s26
    %p88 = scmp.eq.s32.totalorder %s87, 0
    %s90 = sadd.s32 %s89, 1
    %s91 = scalar_select %p88, %s89, %s90
    %p94 = pneg %p88
    %p95 = scmp.eq.s32.totalorder %s11, 1
    %p96 = por %p94, %p95
    %p97 = scmp.ne.s32.totalorder %s89, %s92
    %p98 = scmp.eq.s32.totalorder %s11, 0
    %p99 = por %p97, %p98
    %p100 = scmp.ne.s32.totalorder %s89, %s92
    %p101 = scmp.eq.s32.totalorder %s16, 1
    %p102 = por %p100, %p101
    %p103 = scmp.ne.s32.totalorder %s92, %s93
    %p104 = scmp.eq.s32.totalorder %s16, 0
    %p105 = por %p103, %p104
    %p106 = scmp.ne.s32.totalorder %s92, %s93
    %p107 = scmp.eq.s32.totalorder %s17, 1
    %p108 = por %p106, %p107
    %p110 = scmp.ne.s32.totalorder %s93, %s109
    %p111 = scmp.eq.s32.totalorder %s17, 0
    %p112 = por %p110, %p111
    %s114 = sadd.s32 %s113, 1
    %p117 = scmp.eq.s32.totalorder %s11, 1
    %p118 = scmp.ne.s32.totalorder %s113, %s115
    %p119 = scmp.eq.s32.totalorder %s11, 0
    %p120 = por %p118, %p119
    %p121 = scmp.ne.s32.totalorder %s113, %s115
    %p122 = scmp.eq.s32.totalorder %s16, 1
    %p123 = por %p121, %p122
    %p124 = scmp.ne.s32.totalorder %s115, %s116
    %p125 = scmp.eq.s32.totalorder %s16, 0
    %p126 = por %p124, %p125
    %p127 = scmp.ne.s32.totalorder %s115, %s116
    %p128 = scmp.eq.s32.totalorder %s17, 1
    %p129 = por %p127, %p128
    %p131 = scmp.ne.s32.totalorder %s116, %s130
    %p132 = scmp.eq.s32.totalorder %s17, 0
    %p133 = por %p131, %p132
    %s135 = sadd.s32 %s134, 1
    %p138 = scmp.eq.s32.totalorder %s11, 1
    %p139 = scmp.ne.s32.totalorder %s134, %s136
    %p140 = scmp.eq.s32.totalorder %s11, 0
    %p141 = por %p139, %p140
    %p142 = scmp.ne.s32.totalorder %s134, %s136
    %p143 = scmp.eq.s32.totalorder %s16, 1
    %p144 = por %p142, %p143
    %p145 = scmp.ne.s32.totalorder %s136, %s137
    %p146 = scmp.eq.s32.totalorder %s16, 0
    %p147 = por %p145, %p146
    %p148 = scmp.ne.s32.totalorder %s136, %s137
    %p149 = scmp.eq.s32.totalorder %s17, 1
    %p150 = por %p148, %p149
    %p152 = scmp.ne.s32.totalorder %s137, %s151
    %p153 = scmp.eq.s32.totalorder %s17, 0
    %p154 = por %p152, %p153
    %s155 = ssub.s32 %s18, %s30
    %s156 = ssub.s32 %s19, %s26
    %s157 = sor.u32 %s155, %s156
    %p158 = scmp.eq.s32.totalorder %s157, 0
    %s160 = sadd.s32 %s159, 1
    %s161 = scalar_select %p158, %s159, %s160
    %p164 = pneg %p158
    %p165 = scmp.eq.s32.totalorder %s11, 1
    %p166 = por %p164, %p165
    %p167 = scmp.ne.s32.totalorder %s159, %s162
    %p168 = scmp.eq.s32.totalorder %s11, 0
    %p169 = por %p167, %p168
    %p170 = scmp.ne.s32.totalorder %s159, %s162
    %p171 = scmp.eq.s32.totalorder %s16, 1
    %p172 = por %p170, %p171
    %p173 = scmp.ne.s32.totalorder %s162, %s163
    %p174 = scmp.eq.s32.totalorder %s16, 0
    %p175 = por %p173, %p174
    %p176 = scmp.ne.s32.totalorder %s162, %s163
    %p177 = scmp.eq.s32.totalorder %s17, 1
    %p178 = por %p176, %p177
    %p180 = scmp.ne.s32.totalorder %s163, %s179
    %p181 = scmp.eq.s32.totalorder %s17, 0
    %p182 = por %p180, %p181
    %p183 = scmp.le.s32.totalorder 1, %s11
    %p184 = scmp.lt.s32.totalorder %s11, 3
    %p185 = pnand %p183, %p184
    %p186 = pneg %p185
    // Predicated region
    $region9: #{_lambda_.11} parent=5 // pred_check
      _
    $region10: #{_lambda_.11} parent=5 // pred_check_branch
      %188 = sbr.rel (%p185) target = $region12
    $region11: #{_lambda_.11} parent=5 // pred_region
      %s189 = ssub.s32 %s11, 1
      // Predicated region
      $region13: #{_lambda_.11} parent=11 // pred_check
        %p190 = pneg %p105
      $region14: #{_lambda_.11} parent=11 // pred_check_branch
        %192 = sbr.rel (%p190) target = $region16
      $region15: #{_lambda_.11} parent=11 // pred_region
        %p193 = scmp.lt.s32.totalorder %s21, 0
        %s194 = scalar_select %p193, %s21, 0
        %s195 = smul.addr %s194, 8
        %s196 = scalar_lea.vmem %s2, %s195
      $region16: #{_lambda_.11} parent=11 // pred_fallthru
        _
      // Predicated region
      $region17: #{_lambda_.11} parent=11 // pred_check
        %p197 = pneg %p126
      $region18: #{_lambda_.11} parent=11 // pred_check_branch
        %199 = sbr.rel (%p197) target = $region20
      $region19: #{_lambda_.11} parent=11 // pred_region
        _
      $region20: #{_lambda_.11} parent=11 // pred_fallthru
        _
      // Predicated region
      $region21: #{_lambda_.11} parent=11 // pred_check
        %p200 = pneg %p147
      $region22: #{_lambda_.11} parent=11 // pred_check_branch
        %202 = sbr.rel (%p200) target = $region24
      $region23: #{_lambda_.11} parent=11 // pred_region
        _
      $region24: #{_lambda_.11} parent=11 // pred_fallthru
        _
    $region12: #{_lambda_.11} parent=5 // pred_fallthru
      _
    %p203 = scmp.lt.s32.totalorder %s11, 2
    // Predicated region
    $region25: #{_lambda_.11} parent=5 // pred_check
      %p204 = pneg %p203
    $region26: #{_lambda_.11} parent=5 // pred_check_branch
      %206 = sbr.rel (%p204) target = $region28
    $region27: #{_lambda_.11} parent=5 // pred_region
      // Predicated region
      $region29: #{_lambda_.11} parent=27 // pred_check
        %p207 = pneg %p45
      $region30: #{_lambda_.11} parent=27 // pred_check_branch
        %209 = sbr.rel (%p207) target = $region32
      $region31: #{_lambda_.11} parent=27 // pred_region
        %p210 = scmp.lt.s32.totalorder %s18, 1
        %s211 = scalar_select %p210, %s18, 1
        %p212 = scmp.lt.s32.totalorder %s19, 0
        %s213 = scalar_select %p212, %s19, 0
        %s214 = sadd.s32 %s213, %s211
        %s215 = smul.addr %s214, 8
        %s216 = scalar_lea.vmem %s0, %s215
      $region32: #{_lambda_.11} parent=27 // pred_fallthru
        _
      // Predicated region
      $region33: #{_lambda_.11} parent=27 // pred_check
        %p217 = pneg %p73
      $region34: #{_lambda_.11} parent=27 // pred_check_branch
        %219 = sbr.rel (%p217) target = $region36
      $region35: #{_lambda_.11} parent=27 // pred_region
        %p220 = scmp.lt.s32.totalorder %s18, 1
        %s221 = scalar_select %p220, %s18, 1
        %p222 = scmp.lt.s32.totalorder %s19, 0
        %s223 = scalar_select %p222, %s19, 0
        %s224 = sadd.s32 %s223, %s221
        %s225 = smul.addr %s224, 8
        %s226 = scalar_lea.vmem %s1, %s225
      $region36: #{_lambda_.11} parent=27 // pred_fallthru
        _
    $region28: #{_lambda_.11} parent=5 // pred_fallthru
      _
    %p227 = scmp.le.s32.totalorder 1, %s11
    %p228 = scmp.lt.s32.totalorder %s11, 3
    %p229 = pnand %p227, %p228
    %p230 = pneg %p229
    // Predicated region
    $region37: #{_lambda_.11} parent=5 // pred_check
      _
    $region38: #{_lambda_.11} parent=5 // pred_check_branch
      %232 = sbr.rel (%p229) target = $region40
    $region39: #{_lambda_.11} parent=5 // pred_region
      %s233 = ssub.s32 %s11, 1
      %p234 = scmp.lt.s32.totalorder %s20, 1
      %s235 = scalar_select %p234, %s20, 1
      %p236 = scmp.lt.s32.totalorder %s21, 0
      %s237 = scalar_select %p236, %s21, 0
      %s238 = sadd.s32 %s237, %s235
      %s239 = smul.addr %s238, 8
      %s240 = scalar_lea.vmem %s0, %s239
      %p241 = pneg %p51
      %p242 = pneg %p48
      %p243 = scmp.lt.s32.totalorder %s20, 1
      %s244 = scalar_select %p243, %s20, 1
      %p245 = scmp.lt.s32.totalorder %s21, 0
      %s246 = scalar_select %p245, %s21, 0
      %s247 = sadd.s32 %s246, %s244
      %s248 = smul.addr %s247, 8
      %s249 = scalar_lea.vmem %s1, %s248
      %p250 = pneg %p79
      %p251 = pneg %p76
      %p252 = scmp.lt.s32.totalorder %s21, 0
      %s253 = scalar_select %p252, %s21, 0
      %s254 = smul.addr %s253, 8
      %s255 = scalar_lea.vmem %s2, %s254
      %p256 = pneg %p105
      %p257 = pneg %p102
      %p258 = pneg %p126
      %p259 = pneg %p123
      %p260 = pneg %p147
      %p261 = pneg %p144
      %p262 = pneg %p175
      %p263 = pneg %p172
      %p264 = scmp.lt.s32.totalorder %s20, 1
      %s265 = scalar_select %p264, %s20, 1
      %p266 = scmp.lt.s32.totalorder %s21, 0
      %s267 = scalar_select %p266, %s21, 0
      %s268 = sadd.s32 %s267, %s265
      %s269 = smul.addr %s268, 4
      %s270 = scalar_lea.vmem %s5, %s269
      %p271 = scmp.lt.s32.totalorder %s20, 1
      %s272 = scalar_select %p271, %s20, 1
      %p273 = scmp.lt.s32.totalorder %s21, 0
      %s274 = scalar_select %p273, %s21, 0
      %s275 = sadd.s32 %s274, %s272
      %s276 = smul.addr %s275, 8
      %s277 = scalar_lea.vmem %s0, %s276
      %p278 = scmp.lt.s32.totalorder %s20, 1
      %s279 = scalar_select %p278, %s20, 1
      %p280 = scmp.lt.s32.totalorder %s21, 0
      %s281 = scalar_select %p280, %s21, 0
      %s282 = sadd.s32 %s281, %s279
      %s283 = smul.addr %s282, 8
      %s284 = scalar_lea.vmem %s1, %s283
      %p285 = scmp.lt.s32.totalorder %s21, 0
      %s286 = scalar_select %p285, %s21, 0
      %s287 = smul.addr %s286, 8
      %s288 = scalar_lea.vmem %s2, %s287
      %p289 = scmp.lt.s32.totalorder %s20, 1
      %s290 = scalar_select %p289, %s20, 1
      %p291 = scmp.lt.s32.totalorder %s21, 0
      %s292 = scalar_select %p291, %s21, 0
      %s293 = sadd.s32 %s292, %s290
      %s294 = smul.addr %s293, 4
      %s295 = scalar_lea.vmem %s5, %s294
      %v296 = vld [vmem:[%s277] sm:$0xff]
      %v297 = vld [vmem:[%s284] sm:$0xff]
      %v298 = vadd.f32 %v296, %v297
      %v299 = vld [vmem:[%s288] sm:$0xff]
      %v300 = vadd.f32 %v298, %v299
      %vm301 = vcmask 261120
      %v302 = vsel %vm301, %v300, 0.0
      %303 = vadd.xlane.f32.xlu0 %v302
      %v304 = vpop.xlane.xlu0 %303
      %v305 = vrcp.pop 32.0
      %v306 = vmul.f32 32.0, %v305
      %v307 = vsub.f32 1.0, %v306
      %v308 = vmul.f32 %v305, %v307
      %v309 = vadd.f32 %v305, %v308
      %vm310 = vweird.f32 %v305
      %v311 = vsel %vm310, %v305, %v309
      %v312 = vmul.f32 %v304, %v311
      %v313 = vsub.f32 %v300, %v312
      %v314 = vmul.f32 %v313, %v313
      %v315 = vsel %vm301, %v314, 0.0
      %316 = vadd.xlane.f32.xlu0 %v315
      %v317 = vpop.xlane.xlu0 %316
      %v318 = vmul.f32 %v317, %v311
      %v319 = vadd.f32 %v318, 1e-12
      %v320 = vrsqrt.pop %v319
      %v321 = vmul.f32 %v320, %v319
      %v322 = vmul.f32 %v321, %v320
      %v323 = vmul.f32 0.5, %v322
      %v324 = vsub.f32 1.5, %v323
      %v325 = vmul.f32 %v320, %v324
      %vm326 = vweird.f32 %v319
      %vm327 = vweird.f32 %v320
      %vm328 = vmor %vm326, %vm327
      %v329 = vsel %vm328, %v320, %v325
      %v330 = vmul.f32 %v313, %v329
      %v331 = vld [vmem:[%s3] sm:$0x1]
      %v333 = vperm.slane %v331, 0
      %v335 = vmul.f32 %v330, %v333
      %v336 = vld [vmem:[%s4] sm:$0x1]
      %v338 = vperm.slane %v336, 0
      %v340 = vadd.f32 %v335, %v338
      %v341 = vpack.c.bf16 %v340, %v340
      %vm342 = vcmask 257024
      %343 = vst.msk [vmem:[%s295] sm:$0xf] %vm342, %v341
      %p344 = scmp.lt.s32.totalorder %s20, 1
      %s345 = scalar_select %p344, %s20, 1
      %p346 = scmp.lt.s32.totalorder %s21, 0
      %s347 = scalar_select %p346, %s21, 0
      %s348 = sadd.s32 %s347, %s345
      %s349 = smul.addr %s348, 4
      %s350 = scalar_lea.vmem %s5, %s349
      // Predicated region
      $region41: #{_lambda_.11} parent=39 // pred_check
        %p351 = pneg %p172
      $region42: #{_lambda_.11} parent=39 // pred_check_branch
        %353 = sbr.rel (%p351) target = $region44
      $region43: #{_lambda_.11} parent=39 // pred_region
        _
      $region44: #{_lambda_.11} parent=39 // pred_fallthru
        _
    $region40: #{_lambda_.11} parent=5 // pred_fallthru
      _
    %p354 = scmp.le.s32.totalorder 2, %s11
    // Predicated region
    $region45: #{_lambda_.11} parent=5 // pred_check
      %p355 = pneg %p354
    $region46: #{_lambda_.11} parent=5 // pred_check_branch
      %357 = sbr.rel (%p355) target = $region48
    $region47: #{_lambda_.11} parent=5 // pred_region
      %s358 = ssub.s32 %s11, 2
      // Predicated region
      $region49: #{_lambda_.11} parent=47 // pred_check
        %p359 = pneg %p178
      $region50: #{_lambda_.11} parent=47 // pred_check_branch
        %361 = sbr.rel (%p359) target = $region52
      $region51: #{_lambda_.11} parent=47 // pred_region
        %p362 = scmp.lt.s32.totalorder %s22, 1
        %s363 = scalar_select %p362, %s22, 1
        %p364 = scmp.lt.s32.totalorder %s23, 0
        %s365 = scalar_select %p364, %s23, 0
        %s366 = sadd.s32 %s365, %s363
        %s367 = smul.addr %s366, 4
        %s368 = scalar_lea.vmem %s5, %s367
      $region52: #{_lambda_.11} parent=47 // pred_fallthru
        _
    $region48: #{_lambda_.11} parent=5 // pred_fallthru
      _
  $region6: #{_lambda_.11} parent=0 // loop_footer
    %s15 = sadd.s32 1, %s11
  $region7: #{_lambda_.11} parent=0 // loop_footer_branch
    %10 = sbr.rel target = $region3
  $region8: #{_lambda_.11} parent=0 // loop_exit
    _

// kernel: _lambda_.13
$region0: #{_lambda_.13}
  #allocation0 [shape = 'u32[]', space=smem, size = 0x4, offset = 0x4, fixed_abs, tag = 'smem constant byte address 0x4 - core index']
  #allocation1 [shape = 'u32[72,128]{1,0:T(1,128)}', space=vmem, size = 0x9000, scoped, tag = 'internal scratch']
  #allocation2 [shape = 'f32[8,1]{1,0:T(8,128)}', space=vmem, size = 0x1000, scoped, tag = 'scratch operand']
  #allocation3 [shape = 'f32[8,1]{1,0:T(8,128)}', space=vmem, size = 0x1000, scoped, tag = 'scratch operand']
  #allocation4 [shape = 'f32[8,8]{1,0:T(8,128)}', space=vmem, size = 0x1000, scoped, tag = 'scratch operand']
  %s0 = inlined_call_operand.vmem [shape: bf16[2,4,8,8], index: 0, kind: input, shape index: {}]
  %s1 = inlined_call_operand.vmem [shape: bf16[2,4,8,8], index: 1, kind: input, shape index: {}]
  %s2 = inlined_call_operand.vmem [shape: bf16[2,4,8,8], index: 2, kind: input, shape index: {}]
  %s3 = inlined_call_operand.vmem [shape: f32[2,1,8], index: 3, kind: input, shape index: {}]
  %s4 = inlined_call_operand.vmem [shape: bf16[2,4,8,8], index: 4, kind: output, shape index: {}]
  %s5 = sld [smem:[#allocation0]]
  $region57: #{_lambda_.13} parent=0
    _
  %s7 = ssub.s32 1, %s5
  %s8 = scalar_select 0, %s7, %s5
  loop: start=0, step=1, limit=10
  $region2: #{_lambda_.13} parent=0 // loop_pre_header
    _
  $region3: #{_lambda_.13} parent=0 // loop_header
    %s10 = sphi 0, %s14
    %p11 = scmp.ge.s32.totalorder %s10, 10
    %s17 = sphi 0, %s43
    %s18 = sphi 0, %s39
    %s19 = sphi 0, %s35
    %s20 = sphi 0, %s31
    %s21 = sphi 0, %s17
    %s22 = sphi 0, %s18
    %s23 = sphi 0, %s19
    %s24 = sphi 0, %s20
    %s25 = sphi 0, %s21
    %s26 = sphi 0, %s22
    %s27 = sphi 0, %s23
    %s28 = sphi 0, %s24
    %s50 = sphi 0, %s52
    %s53 = sphi 0, %s50
    %s54 = sphi 0, %s53
    %s70 = sphi 0, %s54
    %s80 = sphi 0, %s82
    %s83 = sphi 0, %s80
    %s84 = sphi 0, %s83
    %s100 = sphi 0, %s84
    %s110 = sphi 0, %s112
    %s113 = sphi 0, %s110
    %s114 = sphi 0, %s113
    %s130 = sphi 0, %s114
    %s138 = sphi 0, %s140
    %s141 = sphi 0, %s138
    %s142 = sphi 0, %s141
    %s158 = sphi 0, %s142
    %s168 = sphi 0, %s170
    %s171 = sphi 0, %s168
    %s172 = sphi 0, %s171
    %s188 = sphi 0, %s172
  $region4: #{_lambda_.13} parent=0 // loop_header_branch
    %13 = sbr.rel (%p11) target = $region8
  $region5: #{_lambda_.13} parent=0 // loop_body
    %s15 = ssub.s32 %s10, 1
    %s16 = ssub.s32 %s10, 2
    %s29 = sadd.s32 1, %s20
    %p30 = scmp.ge.s32.totalorder %s29, 1
    %s31 = scalar_select %p30, 0, %s29
    %s32 = sadd.s32 1, %s19
    %s33 = scalar_select %p30, %s32, %s19
    %p34 = scmp.ge.s32.totalorder %s33, 1
    %s35 = scalar_select %p34, 0, %s33
    %s36 = sadd.s32 1, %s18
    %s37 = scalar_select %p34, %s36, %s18
    %p38 = scmp.ge.s32.totalorder %s37, 4
    %s39 = scalar_select %p38, 0, %s37
    %s40 = sadd.s32 1, %s17
    %s41 = scalar_select %p38, %s40, %s17
    %p42 = scmp.ge.s32.totalorder %s41, 2
    %s43 = scalar_select %p42, 0, %s41
    %s44 = ssub.s32 %s17, %s43
    %s45 = ssub.s32 %s18, %s39
    %s46 = sor.u32 %s44, %s45
    %s47 = ssub.s32 %s19, %s35
    %s48 = sor.u32 %s46, %s47
    %p49 = scmp.eq.s32.totalorder %s48, 0
    %s51 = sadd.s32 %s50, 1
    %s52 = scalar_select %p49, %s50, %s51
    %p55 = pneg %p49
    %p56 = scmp.eq.s32.totalorder %s10, 7
    %p57 = por %p55, %p56
    %p58 = scmp.ne.s32.totalorder %s50, %s53
    %p59 = scmp.eq.s32.totalorder %s10, 0
    %p60 = por %p58, %p59
    %p61 = scmp.ne.s32.totalorder %s50, %s53
    %p62 = scmp.eq.s32.totalorder %s15, 7
    %p63 = por %p61, %p62
    %p64 = scmp.ne.s32.totalorder %s53, %s54
    %p65 = scmp.eq.s32.totalorder %s15, 0
    %p66 = por %p64, %p65
    %p67 = scmp.ne.s32.totalorder %s53, %s54
    %p68 = scmp.eq.s32.totalorder %s16, 7
    %p69 = por %p67, %p68
    %p71 = scmp.ne.s32.totalorder %s54, %s70
    %p72 = scmp.eq.s32.totalorder %s16, 0
    %p73 = por %p71, %p72
    %s74 = ssub.s32 %s17, %s43
    %s75 = ssub.s32 %s18, %s39
    %s76 = sor.u32 %s74, %s75
    %s77 = ssub.s32 %s20, %s31
    %s78 = sor.u32 %s76, %s77
    %p79 = scmp.eq.s32.totalorder %s78, 0
    %s81 = sadd.s32 %s80, 1
    %s82 = scalar_select %p79, %s80, %s81
    %p85 = pneg %p79
    %p86 = scmp.eq.s32.totalorder %s10, 7
    %p87 = por %p85, %p86
    %p88 = scmp.ne.s32.totalorder %s80, %s83
    %p89 = scmp.eq.s32.totalorder %s10, 0
    %p90 = por %p88, %p89
    %p91 = scmp.ne.s32.totalorder %s80, %s83
    %p92 = scmp.eq.s32.totalorder %s15, 7
    %p93 = por %p91, %p92
    %p94 = scmp.ne.s32.totalorder %s83, %s84
    %p95 = scmp.eq.s32.totalorder %s15, 0
    %p96 = por %p94, %p95
    %p97 = scmp.ne.s32.totalorder %s83, %s84
    %p98 = scmp.eq.s32.totalorder %s16, 7
    %p99 = por %p97, %p98
    %p101 = scmp.ne.s32.totalorder %s84, %s100
    %p102 = scmp.eq.s32.totalorder %s16, 0
    %p103 = por %p101, %p102
    %s104 = ssub.s32 %s17, %s43
    %s105 = ssub.s32 %s18, %s39
    %s106 = sor.u32 %s104, %s105
    %s107 = ssub.s32 %s20, %s31
    %s108 = sor.u32 %s106, %s107
    %p109 = scmp.eq.s32.totalorder %s108, 0
    %s111 = sadd.s32 %s110, 1
    %s112 = scalar_select %p109, %s110, %s111
    %p115 = pneg %p109
    %p116 = scmp.eq.s32.totalorder %s10, 7
    %p117 = por %p115, %p116
    %p118 = scmp.ne.s32.totalorder %s110, %s113
    %p119 = scmp.eq.s32.totalorder %s10, 0
    %p120 = por %p118, %p119
    %p121 = scmp.ne.s32.totalorder %s110, %s113
    %p122 = scmp.eq.s32.totalorder %s15, 7
    %p123 = por %p121, %p122
    %p124 = scmp.ne.s32.totalorder %s113, %s114
    %p125 = scmp.eq.s32.totalorder %s15, 0
    %p126 = por %p124, %p125
    %p127 = scmp.ne.s32.totalorder %s113, %s114
    %p128 = scmp.eq.s32.totalorder %s16, 7
    %p129 = por %p127, %p128
    %p131 = scmp.ne.s32.totalorder %s114, %s130
    %p132 = scmp.eq.s32.totalorder %s16, 0
    %p133 = por %p131, %p132
    %s134 = ssub.s32 %s17, %s43
    %s135 = ssub.s32 %s20, %s31
    %s136 = sor.u32 %s134, %s135
    %p137 = scmp.eq.s32.totalorder %s136, 0
    %s139 = sadd.s32 %s138, 1
    %s140 = scalar_select %p137, %s138, %s139
    %p143 = pneg %p137
    %p144 = scmp.eq.s32.totalorder %s10, 7
    %p145 = por %p143, %p144
    %p146 = scmp.ne.s32.totalorder %s138, %s141
    %p147 = scmp.eq.s32.totalorder %s10, 0
    %p148 = por %p146, %p147
    %p149 = scmp.ne.s32.totalorder %s138, %s141
    %p150 = scmp.eq.s32.totalorder %s15, 7
    %p151 = por %p149, %p150
    %p152 = scmp.ne.s32.totalorder %s141, %s142
    %p153 = scmp.eq.s32.totalorder %s15, 0
    %p154 = por %p152, %p153
    %p155 = scmp.ne.s32.totalorder %s141, %s142
    %p156 = scmp.eq.s32.totalorder %s16, 7
    %p157 = por %p155, %p156
    %p159 = scmp.ne.s32.totalorder %s142, %s158
    %p160 = scmp.eq.s32.totalorder %s16, 0
    %p161 = por %p159, %p160
    %s162 = ssub.s32 %s17, %s43
    %s163 = ssub.s32 %s18, %s39
    %s164 = sor.u32 %s162, %s163
    %s165 = ssub.s32 %s19, %s35
    %s166 = sor.u32 %s164, %s165
    %p167 = scmp.eq.s32.totalorder %s166, 0
    %s169 = sadd.s32 %s168, 1
    %s170 = scalar_select %p167, %s168, %s169
    %p173 = pneg %p167
    %p174 = scmp.eq.s32.totalorder %s10, 7
    %p175 = por %p173, %p174
    %p176 = scmp.ne.s32.totalorder %s168, %s171
    %p177 = scmp.eq.s32.totalorder %s10, 0
    %p178 = por %p176, %p177
    %p179 = scmp.ne.s32.totalorder %s168, %s171
    %p180 = scmp.eq.s32.totalorder %s15, 7
    %p181 = por %p179, %p180
    %p182 = scmp.ne.s32.totalorder %s171, %s172
    %p183 = scmp.eq.s32.totalorder %s15, 0
    %p184 = por %p182, %p183
    %p185 = scmp.ne.s32.totalorder %s171, %s172
    %p186 = scmp.eq.s32.totalorder %s16, 7
    %p187 = por %p185, %p186
    %p189 = scmp.ne.s32.totalorder %s172, %s188
    %p190 = scmp.eq.s32.totalorder %s16, 0
    %p191 = por %p189, %p190
    %p192 = scmp.le.s32.totalorder 1, %s10
    %p193 = scmp.lt.s32.totalorder %s10, 9
    %p194 = pnand %p192, %p193
    %p195 = pneg %p194
    // Predicated region
    $region9: #{_lambda_.13} parent=5 // pred_check
      _
    $region10: #{_lambda_.13} parent=5 // pred_check_branch
      %197 = sbr.rel (%p194) target = $region12
    $region11: #{_lambda_.13} parent=5 // pred_region
      %s198 = ssub.s32 %s10, 1
    $region12: #{_lambda_.13} parent=5 // pred_fallthru
      _
    %p199 = scmp.lt.s32.totalorder %s10, 8
    // Predicated region
    $region13: #{_lambda_.13} parent=5 // pred_check
      %p200 = pneg %p199
    $region14: #{_lambda_.13} parent=5 // pred_check_branch
      %202 = sbr.rel (%p200) target = $region16
    $region15: #{_lambda_.13} parent=5 // pred_region
      // Predicated region
      $region17: #{_lambda_.13} parent=15 // pred_check
        %p203 = pneg %p60
      $region18: #{_lambda_.13} parent=15 // pred_check_branch
        %205 = sbr.rel (%p203) target = $region20
      $region19: #{_lambda_.13} parent=15 // pred_region
        %p206 = scmp.lt.s32.totalorder %s17, 1
        %s207 = scalar_select %p206, %s17, 1
        %p208 = scmp.lt.s32.totalorder %s18, 3
        %s209 = scalar_select %p208, %s18, 3
        %p210 = scmp.lt.s32.totalorder %s19, 0
        %s211 = scalar_select %p210, %s19, 0
        %s212 = sadd.s32 %s211, %s209
        %s213 = smul.addr %s207, 4
        %s214 = sadd.s32 %s212, %s213
        %s215 = smul.addr %s214, 4
        %s216 = scalar_lea.vmem %s0, %s215
      $region20: #{_lambda_.13} parent=15 // pred_fallthru
        _
      // Predicated region
      $region21: #{_lambda_.13} parent=15 // pred_check
        %p217 = pneg %p90
      $region22: #{_lambda_.13} parent=15 // pred_check_branch
        %219 = sbr.rel (%p217) target = $region24
      $region23: #{_lambda_.13} parent=15 // pred_region
        %p220 = scmp.lt.s32.totalorder %s17, 1
        %s221 = scalar_select %p220, %s17, 1
        %p222 = scmp.lt.s32.totalorder %s18, 3
        %s223 = scalar_select %p222, %s18, 3
        %p224 = scmp.lt.s32.totalorder %s20, 0
        %s225 = scalar_select %p224, %s20, 0
        %s226 = sadd.s32 %s225, %s223
        %s227 = smul.addr %s221, 4
        %s228 = sadd.s32 %s226, %s227
        %s229 = smul.addr %s228, 4
        %s230 = scalar_lea.vmem %s1, %s229
      $region24: #{_lambda_.13} parent=15 // pred_fallthru
        _
      // Predicated region
      $region25: #{_lambda_.13} parent=15 // pred_check
        %p231 = pneg %p120
      $region26: #{_lambda_.13} parent=15 // pred_check_branch
        %233 = sbr.rel (%p231) target = $region28
      $region27: #{_lambda_.13} parent=15 // pred_region
        %p234 = scmp.lt.s32.totalorder %s17, 1
        %s235 = scalar_select %p234, %s17, 1
        %p236 = scmp.lt.s32.totalorder %s18, 3
        %s237 = scalar_select %p236, %s18, 3
        %p238 = scmp.lt.s32.totalorder %s20, 0
        %s239 = scalar_select %p238, %s20, 0
        %s240 = sadd.s32 %s239, %s237
        %s241 = smul.addr %s235, 4
        %s242 = sadd.s32 %s240, %s241
        %s243 = smul.addr %s242, 4
        %s244 = scalar_lea.vmem %s2, %s243
      $region28: #{_lambda_.13} parent=15 // pred_fallthru
        _
      // Predicated region
      $region29: #{_lambda_.13} parent=15 // pred_check
        %p245 = pneg %p148
      $region30: #{_lambda_.13} parent=15 // pred_check_branch
        %247 = sbr.rel (%p245) target = $region32
      $region31: #{_lambda_.13} parent=15 // pred_region
        %p248 = scmp.lt.s32.totalorder %s17, 1
        %s249 = scalar_select %p248, %s17, 1
        %p250 = scmp.lt.s32.totalorder %s20, 0
        %s251 = scalar_select %p250, %s20, 0
        %s252 = sadd.s32 %s251, %s249
        %s253 = scalar_lea.vmem %s3, %s252
      $region32: #{_lambda_.13} parent=15 // pred_fallthru
        _
    $region16: #{_lambda_.13} parent=5 // pred_fallthru
      _
    %p254 = scmp.le.s32.totalorder 1, %s10
    %p255 = scmp.lt.s32.totalorder %s10, 9
    %p256 = pnand %p254, %p255
    %p257 = pneg %p256
    // Predicated region
    $region33: #{_lambda_.13} parent=5 // pred_check
      _
    $region34: #{_lambda_.13} parent=5 // pred_check_branch
      %259 = sbr.rel (%p256) target = $region36
    $region35: #{_lambda_.13} parent=5 // pred_region
      %s260 = ssub.s32 %s10, 1
      %p261 = scmp.lt.s32.totalorder %s21, 1
      %s262 = scalar_select %p261, %s21, 1
      %p263 = scmp.lt.s32.totalorder %s22, 3
      %s264 = scalar_select %p263, %s22, 3
      %p265 = scmp.lt.s32.totalorder %s23, 0
      %s266 = scalar_select %p265, %s23, 0
      %s267 = sadd.s32 %s266, %s264
      %s268 = smul.addr %s262, 4
      %s269 = sadd.s32 %s267, %s268
      %s270 = smul.addr %s269, 4
      %s271 = scalar_lea.vmem %s0, %s270
      %p272 = pneg %p66
      %p273 = pneg %p63
      %p274 = scmp.lt.s32.totalorder %s21, 1
      %s275 = scalar_select %p274, %s21, 1
      %p276 = scmp.lt.s32.totalorder %s22, 3
      %s277 = scalar_select %p276, %s22, 3
      %p278 = scmp.lt.s32.totalorder %s24, 0
      %s279 = scalar_select %p278, %s24, 0
      %s280 = sadd.s32 %s279, %s277
      %s281 = smul.addr %s275, 4
      %s282 = sadd.s32 %s280, %s281
      %s283 = smul.addr %s282, 4
      %s284 = scalar_lea.vmem %s1, %s283
      %p285 = pneg %p96
      %p286 = pneg %p93
      %p287 = scmp.lt.s32.totalorder %s21, 1
      %s288 = scalar_select %p287, %s21, 1
      %p289 = scmp.lt.s32.totalorder %s22, 3
      %s290 = scalar_select %p289, %s22, 3
      %p291 = scmp.lt.s32.totalorder %s24, 0
      %s292 = scalar_select %p291, %s24, 0
      %s293 = sadd.s32 %s292, %s290
      %s294 = smul.addr %s288, 4
      %s295 = sadd.s32 %s293, %s294
      %s296 = smul.addr %s295, 4
      %s297 = scalar_lea.vmem %s2, %s296
      %p298 = pneg %p126
      %p299 = pneg %p123
      %p300 = scmp.lt.s32.totalorder %s21, 1
      %s301 = scalar_select %p300, %s21, 1
      %p302 = scmp.lt.s32.totalorder %s24, 0
      %s303 = scalar_select %p302, %s24, 0
      %s304 = sadd.s32 %s303, %s301
      %s305 = scalar_lea.vmem %s3, %s304
      %p306 = pneg %p154
      %p307 = pneg %p151
      %p308 = pneg %p184
      %p309 = pneg %p181
      %p310 = scmp.lt.s32.totalorder %s21, 1
      %s311 = scalar_select %p310, %s21, 1
      %p312 = scmp.lt.s32.totalorder %s22, 3
      %s313 = scalar_select %p312, %s22, 3
      %p314 = scmp.lt.s32.totalorder %s23, 0
      %s315 = scalar_select %p314, %s23, 0
      %s316 = sadd.s32 %s315, %s313
      %s317 = smul.addr %s311, 4
      %s318 = sadd.s32 %s316, %s317
      %s319 = smul.addr %s318, 4
      %s320 = scalar_lea.vmem %s4, %s319
      %p321 = scmp.lt.s32.totalorder %s21, 1
      %s322 = scalar_select %p321, %s21, 1
      %p323 = scmp.lt.s32.totalorder %s22, 3
      %s324 = scalar_select %p323, %s22, 3
      %p325 = scmp.lt.s32.totalorder %s23, 0
      %s326 = scalar_select %p325, %s23, 0
      %s327 = sadd.s32 %s326, %s324
      %s328 = smul.addr %s322, 4
      %s329 = sadd.s32 %s327, %s328
      %s330 = smul.addr %s329, 4
      %s331 = scalar_lea.vmem %s0, %s330
      %p332 = scmp.lt.s32.totalorder %s21, 1
      %s333 = scalar_select %p332, %s21, 1
      %p334 = scmp.lt.s32.totalorder %s22, 3
      %s335 = scalar_select %p334, %s22, 3
      %p336 = scmp.lt.s32.totalorder %s24, 0
      %s337 = scalar_select %p336, %s24, 0
      %s338 = sadd.s32 %s337, %s335
      %s339 = smul.addr %s333, 4
      %s340 = sadd.s32 %s338, %s339
      %s341 = smul.addr %s340, 4
      %s342 = scalar_lea.vmem %s1, %s341
      %p343 = scmp.lt.s32.totalorder %s21, 1
      %s344 = scalar_select %p343, %s21, 1
      %p345 = scmp.lt.s32.totalorder %s22, 3
      %s346 = scalar_select %p345, %s22, 3
      %p347 = scmp.lt.s32.totalorder %s24, 0
      %s348 = scalar_select %p347, %s24, 0
      %s349 = sadd.s32 %s348, %s346
      %s350 = smul.addr %s344, 4
      %s351 = sadd.s32 %s349, %s350
      %s352 = smul.addr %s351, 4
      %s353 = scalar_lea.vmem %s2, %s352
      %p354 = scmp.lt.s32.totalorder %s21, 1
      %s355 = scalar_select %p354, %s21, 1
      %p356 = scmp.lt.s32.totalorder %s24, 0
      %s357 = scalar_select %p356, %s24, 0
      %s358 = sadd.s32 %s357, %s355
      %s359 = scalar_lea.vmem %s3, %s358
      %p360 = scmp.lt.s32.totalorder %s21, 1
      %s361 = scalar_select %p360, %s21, 1
      %p362 = scmp.lt.s32.totalorder %s22, 3
      %s363 = scalar_select %p362, %s22, 3
      %p364 = scmp.lt.s32.totalorder %s23, 0
      %s365 = scalar_select %p364, %s23, 0
      %s366 = sadd.s32 %s365, %s363
      %s367 = smul.addr %s361, 4
      %s368 = sadd.s32 %s366, %s367
      %s369 = smul.addr %s368, 4
      %s370 = scalar_lea.vmem %s4, %s369
      %p372 = scmp.eq.s32.totalorder %s24, 0
      // Predicated region
      $region37: #{_lambda_.13} parent=35 // pred_check
        %p373 = pneg %p372
      $region38: #{_lambda_.13} parent=35 // pred_check_branch
        %375 = sbr.rel (%p373) target = $region40
      $region39: #{_lambda_.13} parent=35 // pred_region
        %vm376 = vcmask 7168
        %377 = vst.msk [vmem:[#allocation2] sm:$0xff] %vm376, -1e+30
        %378 = vst.msk [vmem:[#allocation3] sm:$0xff] %vm376, 0.0
        %vm379 = vcmask 64512
        %380 = vst.msk [vmem:[#allocation4] sm:$0xff] %vm379, 0.0
      $region40: #{_lambda_.13} parent=35 // pred_fallthru
        _
      %v381 = vld [vmem:[%s331] sm:$0xf]
      %v382 = vld [vmem:[%s342] sm:$0xf]
      %v383 = vld [vmem:[%s353] sm:$0xf]
      %vm384 = vcmask 64512
      %v386 = vsel %vm384, %v381, 0
      %v389 = vsel %vm384, %v382, 0
      %391 = vmatpush.bf16.xpose.msra.mxu0 0
      %392 = vmatpush.bf16.xpose.msra.mxu0 0
      %393 = vmatpush.bf16.xpose.msra.mxu0 0
      %394 = vmatpush.bf16.xpose.msra.mxu0 0
      %395 = vmatpush.bf16.xpose.msra.mxu0 0
      %396 = vmatpush.bf16.xpose.msra.mxu0 0
      %397 = vmatpush.bf16.xpose.msra.mxu0 0
      %398 = vmatpush.bf16.xpose.msra.mxu0 %v389
      %399 = vmatmul.bf16.gmra.mxu0 %v386
      %v400 = vpop.f32.mrf.mxu0
      %v401 = vadd.f32 0.0, %v400
      %v402 = vpop.f32.mrf.mxu0
      %403 = vdwg.mxu0
      %v404 = vmul.f32 %v401, 0.35355338
      %v405 = vld [vmem:[%s359] sm:$0x1]
      %v407 = vperm.slane %v405, 0
      %v409 = vadd.f32 %v404, %v407
      %v410 = vld [vmem:[#allocation2] sm:$0xff]
      %v411 = vsel %vm384, %v409, -inf
      %412 = vmax.xlane.f32.xlu0 %v411
      %v413 = vpop.xlane.xlu0 %412
      %v414 = vmax.f32 %v410, %v413
      %v415 = vsub.f32 %v410, %v414
      %v416 = vmul.f32 %v415, 1.442695
      %v417 = vpow.pop %v416
      %419 = vset.pattern.permute.xlu0 0
      %420 = vperm.xlu0 %419, %v414
      %v421 = vpop.permute.xlu0 %420
      %v423 = vsub.f32 %v409, %v421
      %v424 = vmul.f32 %v423, 1.442695
      %v425 = vpow.pop %v424
      %v426 = vld [vmem:[#allocation3] sm:$0xff]
      %v427 = vmul.f32 %v417, %v426
      %v428 = vsel %vm384, %v425, 0.0
      %429 = vadd.xlane.f32.xlu0 %v428
      %v430 = vpop.xlane.xlu0 %429
      %v431 = vadd.f32 %v427, %v430
      %vm432 = vcmask 7168
      %433 = vst.msk [vmem:[#allocation3] sm:$0xff] %vm432, %v431
      %v434 = vld [vmem:[#allocation4] sm:$0xff]
      %436 = vset.pattern.permute.xlu0 0
      %437 = vperm.xlu0 %436, %v417
      %v438 = vpop.permute.xlu0 %437
      %v440 = vmul.f32 %v438, %v434
      %v441 = vpack.c.bf16 %v425, %v425
      %v443 = vsel %vm384, %v441, 0
      %vm445 = vcmask 1043456
      %v447 = vsel %vm445, %v383, 0
      %449 = vmatpush.bf16.msra.mxu0 0
      %450 = vmatpush.bf16.msra.mxu0 0
      %451 = vmatpush.bf16.msra.mxu0 0
      %452 = vmatpush.bf16.msra.mxu0 0
      %453 = vmatpush.bf16.msra.mxu0 0
      %454 = vmatpush.bf16.msra.mxu0 0
      %455 = vmatpush.bf16.msra.mxu0 0
      %456 = vmatpush.bf16.msra.mxu0 %v447
      %457 = vmatmul.bf16.gmra.mxu0 %v443
      %v458 = vpop.f32.mrf.mxu0
      %v459 = vadd.f32 0.0, %v458
      %v460 = vpop.f32.mrf.mxu0
      %461 = vdwg.mxu0
      %v462 = vadd.f32 %v440, %v459
      %463 = vst.msk [vmem:[#allocation4] sm:$0xff] %vm384, %v462
      %464 = vst.msk [vmem:[#allocation2] sm:$0xff] %vm432, %v414
      // Predicated region
      $region41: #{_lambda_.13} parent=35 // pred_check
        %p465 = pneg %p372
      $region42: #{_lambda_.13} parent=35 // pred_check_branch
        %467 = sbr.rel (%p465) target = $region44
      $region43: #{_lambda_.13} parent=35 // pred_region
        %v468 = vld [vmem:[#allocation4] sm:$0xff]
        %v469 = vld [vmem:[#allocation3] sm:$0xff]
        %v470 = vrcp.pop %v469
        %472 = vset.pattern.permute.xlu0 0
        %473 = vperm.xlu0 %472, %v470
        %v474 = vpop.permute.xlu0 %473
        %v476 = vmul.f32 %v468, %v474
        %v477 = vpack.c.bf16 %v476, %v476
        %vm478 = vcmask 60416
        %479 = vst.msk [vmem:[%s370] sm:$0xf] %vm478, %v477
      $region44: #{_lambda_.13} parent=35 // pred_fallthru
        _
      %p480 = scmp.lt.s32.totalorder %s21, 1
      %s481 = scalar_select %p480, %s21, 1
      %p482 = scmp.lt.s32.totalorder %s22, 3
      %s483 = scalar_select %p482, %s22, 3
      %p484 = scmp.lt.s32.totalorder %s23, 0
      %s485 = scalar_select %p484, %s23, 0
      %s486 = sadd.s32 %s485, %s483
      %s487 = smul.addr %s481, 4
      %s488 = sadd.s32 %s486, %s487
      %s489 = smul.addr %s488, 4
      %s490 = scalar_lea.vmem %s4, %s489
      // Predicated region
      $region45: #{_lambda_.13} parent=35 // pred_check
        %p491 = pneg %p181
      $region46: #{_lambda_.13} parent=35 // pred_check_branch
        %493 = sbr.rel (%p491) target = $region48
      $region47: #{_lambda_.13} parent=35 // pred_region
        _
      $region48: #{_lambda_.13} parent=35 // pred_fallthru
        _
    $region36: #{_lambda_.13} parent=5 // pred_fallthru
      _
    %p494 = scmp.le.s32.totalorder 2, %s10
    // Predicated region
    $region49: #{_lambda_.13} parent=5 // pred_check
      %p495 = pneg %p494
    $region50: #{_lambda_.13} parent=5 // pred_check_branch
      %497 = sbr.rel (%p495) target = $region52
    $region51: #{_lambda_.13} parent=5 // pred_region
      %s498 = ssub.s32 %s10, 2
      // Predicated region
      $region53: #{_lambda_.13} parent=51 // pred_check
        %p499 = pneg %p187
      $region54: #{_lambda_.13} parent=51 // pred_check_branch
        %501 = sbr.rel (%p499) target = $region56
      $region55: #{_lambda_.13} parent=51 // pred_region
        %p502 = scmp.lt.s32.totalorder %s25, 1
        %s503 = scalar_select %p502, %s25, 1
        %p504 = scmp.lt.s32.totalorder %s26, 3
        %s505 = scalar_select %p504, %s26, 3
        %p506 = scmp.lt.s32.totalorder %s27, 0
        %s507 = scalar_select %p506, %s27, 0
        %s508 = sadd.s32 %s507, %s505
        %s509 = smul.addr %s503, 4
        %s510 = sadd.s32 %s508, %s509
        %s511 = smul.addr %s510, 4
        %s512 = scalar_lea.vmem %s4, %s511
      $region56: #{_lambda_.13} parent=51 // pred_fallthru
        _
    $region52: #{_lambda_.13} parent=5 // pred_fallthru
      _
  $region6: #{_lambda_.13} parent=0 // loop_footer
    %s14 = sadd.s32 1, %s10
  $region7: #{_lambda_.13} parent=0 // loop_footer_branch
    %9 = sbr.rel target = $region3
  $region8: #{_lambda_.13} parent=0 // loop_exit
    _

// kernel: _lambda_.14
$region0: #{_lambda_.14}
  #allocation0 [shape = 'u32[]', space=smem, size = 0x4, offset = 0x4, fixed_abs, tag = 'smem constant byte address 0x4 - core index']
  #allocation1 [shape = 'u32[72,128]{1,0:T(1,128)}', space=vmem, size = 0x9000, scoped, tag = 'internal scratch']
  #allocation2 [shape = 'f32[16,32]{1,0:T(8,128)}', space=vmem, size = 0x2000, scoped, tag = 'scratch operand']
  %s0 = inlined_call_operand.vmem [shape: bf16[16,32], index: 0, kind: input, shape index: {}]
  %s1 = inlined_call_operand.vmem [shape: bf16[32,32], index: 1, kind: input, shape index: {}]
  %s2 = inlined_call_operand.vmem [shape: f32[1,32], index: 2, kind: input, shape index: {}]
  %s3 = inlined_call_operand.vmem [shape: bf16[16,32], index: 3, kind: input, shape index: {}]
  %s4 = inlined_call_operand.vmem [shape: f32[1,32], index: 4, kind: input, shape index: {}]
  %s5 = inlined_call_operand.vmem [shape: f32[1,32], index: 5, kind: input, shape index: {}]
  %s6 = inlined_call_operand.vmem [shape: bf16[16,32], index: 6, kind: output, shape index: {}]
  %s7 = sld [smem:[#allocation0]]
  $region42: #{_lambda_.14} parent=0
    _
  %s9 = ssub.s32 1, %s7
  %s10 = scalar_select 0, %s9, %s7
  // Predicated region
  $region2: #{_lambda_.14} parent=0 // pred_check
    _
  $region3: #{_lambda_.14} parent=0 // pred_check_branch
    %12 = sbr.rel (0) target = $region5
  $region4: #{_lambda_.14} parent=0 // pred_region
    _
  $region5: #{_lambda_.14} parent=0 // pred_fallthru
    _
  // Predicated region
  $region6: #{_lambda_.14} parent=0 // pred_check
    _
  $region7: #{_lambda_.14} parent=0 // pred_check_branch
    %14 = sbr.rel (0) target = $region9
  $region8: #{_lambda_.14} parent=0 // pred_region
    _
  $region9: #{_lambda_.14} parent=0 // pred_fallthru
    _
  // Predicated region
  $region10: #{_lambda_.14} parent=0 // pred_check
    _
  $region11: #{_lambda_.14} parent=0 // pred_check_branch
    %16 = sbr.rel (0) target = $region13
  $region12: #{_lambda_.14} parent=0 // pred_region
    _
  $region13: #{_lambda_.14} parent=0 // pred_fallthru
    _
  // Predicated region
  $region14: #{_lambda_.14} parent=0 // pred_check
    _
  $region15: #{_lambda_.14} parent=0 // pred_check_branch
    %18 = sbr.rel (0) target = $region17
  $region16: #{_lambda_.14} parent=0 // pred_region
    _
  $region17: #{_lambda_.14} parent=0 // pred_fallthru
    _
  // Predicated region
  $region18: #{_lambda_.14} parent=0 // pred_check
    _
  $region19: #{_lambda_.14} parent=0 // pred_check_branch
    %20 = sbr.rel (0) target = $region21
  $region20: #{_lambda_.14} parent=0 // pred_region
    _
  $region21: #{_lambda_.14} parent=0 // pred_fallthru
    _
  // Predicated region
  $region22: #{_lambda_.14} parent=0 // pred_check
    _
  $region23: #{_lambda_.14} parent=0 // pred_check_branch
    %22 = sbr.rel (0) target = $region25
  $region24: #{_lambda_.14} parent=0 // pred_region
    _
  $region25: #{_lambda_.14} parent=0 // pred_fallthru
    _
  %p24 = scmp.eq.s32.totalorder 0, 0
  // Predicated region
  $region26: #{_lambda_.14} parent=0 // pred_check
    %p25 = pneg %p24
  $region27: #{_lambda_.14} parent=0 // pred_check_branch
    %27 = sbr.rel (%p25) target = $region29
  $region28: #{_lambda_.14} parent=0 // pred_region
    %vm28 = vcmask 261120
    %29 = vst.msk [vmem:[#allocation2] sm:$0xff] %vm28, 0.0
    %30 = vst.msk [vmem:[#allocation2 + $0x8] sm:$0xff] %vm28, 0.0
  $region29: #{_lambda_.14} parent=0 // pred_fallthru
    _
  %v31 = vld [vmem:[#allocation2] sm:$0xff]
  %v32 = vld [vmem:[#allocation2 + $0x8] sm:$0xff]
  %v33 = vld [vmem:[%s0] sm:$0xf]
  %v34 = vld [vmem:[%s0 + $0x4] sm:$0xf]
  %v35 = vld [vmem:[%s1] sm:$0xf]
  %v36 = vld [vmem:[%s1 + $0x4] sm:$0xf]
  %v37 = vld [vmem:[%s1 + $0x8] sm:$0xf]
  %v38 = vld [vmem:[%s1 + $0xc] sm:$0xf]
  %v41 = vunpack.c.l.b16 %v33
  %v42 = vunpack.c.l.b16 %v34
  %v43 = vpack.c.b16 %v42, %v41
  %v48 = vunpack.c.l.b16 %v35
  %v49 = vunpack.c.l.b16 %v36
  %v50 = vunpack.c.l.b16 %v37
  %v51 = vunpack.c.l.b16 %v38
  %v52 = vpack.c.b16 %v49, %v48
  %v53 = vpack.c.b16 %v51, %v50
  %vm56 = vcmask 261120
  %v58 = vsel %vm56, %v43, 0
  %60 = vmatpush.bf16.msra.mxu0 0
  %61 = vmatpush.bf16.msra.mxu0 0
  %62 = vmatpush.bf16.msra.mxu0 0
  %63 = vmatpush.bf16.msra.mxu0 0
  %64 = vmatpush.bf16.msra.mxu0 0
  %65 = vmatpush.bf16.msra.mxu0 0
  %66 = vmatpush.bf16.msra.mxu0 %v53
  %67 = vmatpush.bf16.msra.mxu0 %v52
  %68 = vmatmul.bf16.gmra.mxu0 %v58
  %v69 = vpop.f32.mrf.mxu0
  %v70 = vadd.f32 0.0, %v69
  %v71 = vpop.f32.mrf.mxu0
  %v72 = vadd.f32 0.0, %v71
  %73 = vdwg.mxu0
  %v74 = vadd.f32 %v31, %v70
  %v75 = vadd.f32 %v32, %v72
  %76 = vst.msk [vmem:[#allocation2] sm:$0xff] %vm56, %v74
  %77 = vst.msk [vmem:[#allocation2 + $0x8] sm:$0xff] %vm56, %v75
  // Predicated region
  $region30: #{_lambda_.14} parent=0 // pred_check
    %p78 = pneg %p24
  $region31: #{_lambda_.14} parent=0 // pred_check_branch
    %80 = sbr.rel (%p78) target = $region33
  $region32: #{_lambda_.14} parent=0 // pred_region
    %v81 = vld [vmem:[#allocation2] sm:$0xff]
    %v82 = vld [vmem:[#allocation2 + $0x8] sm:$0xff]
    %v83 = vld [vmem:[%s2] sm:$0x1]
    %v85 = vperm.slane %v83, 0
    %v87 = vadd.f32 %v81, %v85
    %v88 = vadd.f32 %v82, %v85
    %v89 = vld [vmem:[%s3] sm:$0xf]
    %v90 = vld [vmem:[%s3 + $0x4] sm:$0xf]
    %v91 = vunpack.c.l.bf16 %v89
    %v92 = vunpack.c.l.bf16 %v90
    %v93 = vadd.f32 %v87, %v91
    %v94 = vadd.f32 %v88, %v92
    %v95 = vsel %vm56, %v93, 0.0
    %96 = vadd.xlane.f32.xlu0 %v95
    %v97 = vpop.xlane.xlu0 %96
    %v98 = vsel %vm56, %v94, 0.0
    %99 = vadd.xlane.f32.xlu0 %v98
    %v100 = vpop.xlane.xlu0 %99
    %v101 = vrcp.pop 32.0
    %v102 = vmul.f32 32.0, %v101
    %v103 = vsub.f32 1.0, %v102
    %v104 = vmul.f32 %v101, %v103
    %v105 = vadd.f32 %v101, %v104
    %vm106 = vweird.f32 %v101
    %v107 = vsel %vm106, %v101, %v105
    %v108 = vmul.f32 %v97, %v107
    %v109 = vmul.f32 %v100, %v107
    %v110 = vsub.f32 %v93, %v108
    %v111 = vsub.f32 %v94, %v109
    %v112 = vmul.f32 %v110, %v110
    %v113 = vmul.f32 %v111, %v111
    %v114 = vsel %vm56, %v112, 0.0
    %115 = vadd.xlane.f32.xlu0 %v114
    %v116 = vpop.xlane.xlu0 %115
    %v117 = vsel %vm56, %v113, 0.0
    %118 = vadd.xlane.f32.xlu0 %v117
    %v119 = vpop.xlane.xlu0 %118
    %v120 = vmul.f32 %v116, %v107
    %v121 = vmul.f32 %v119, %v107
    %v122 = vadd.f32 %v120, 1e-12
    %v123 = vadd.f32 %v121, 1e-12
    %v124 = vrsqrt.pop %v122
    %v125 = vmul.f32 %v124, %v122
    %v126 = vmul.f32 %v125, %v124
    %v127 = vmul.f32 0.5, %v126
    %v128 = vsub.f32 1.5, %v127
    %v129 = vmul.f32 %v124, %v128
    %vm130 = vweird.f32 %v122
    %vm131 = vweird.f32 %v124
    %vm132 = vmor %vm130, %vm131
    %v133 = vsel %vm132, %v124, %v129
    %v134 = vrsqrt.pop %v123
    %v135 = vmul.f32 %v134, %v123
    %v136 = vmul.f32 %v135, %v134
    %v137 = vmul.f32 0.5, %v136
    %v138 = vsub.f32 1.5, %v137
    %v139 = vmul.f32 %v134, %v138
    %vm140 = vweird.f32 %v123
    %vm141 = vweird.f32 %v134
    %vm142 = vmor %vm140, %vm141
    %v143 = vsel %vm142, %v134, %v139
    %v144 = vmul.f32 %v110, %v133
    %v145 = vmul.f32 %v111, %v143
    %v146 = vld [vmem:[%s4] sm:$0x1]
    %v148 = vperm.slane %v146, 0
    %v150 = vmul.f32 %v144, %v148
    %v151 = vmul.f32 %v145, %v148
    %v152 = vld [vmem:[%s5] sm:$0x1]
    %v154 = vperm.slane %v152, 0
    %v156 = vadd.f32 %v150, %v154
    %v157 = vadd.f32 %v151, %v154
    %v158 = vpack.c.bf16 %v156, %v156
    %v159 = vpack.c.bf16 %v157, %v157
    %vm160 = vcmask 257024
    %161 = vst.msk [vmem:[%s6] sm:$0xf] %vm160, %v158
    %162 = vst.msk [vmem:[%s6 + $0x4] sm:$0xf] %vm160, %v159
  $region33: #{_lambda_.14} parent=0 // pred_fallthru
    _
  // Predicated region
  $region34: #{_lambda_.14} parent=0 // pred_check
    _
  $region35: #{_lambda_.14} parent=0 // pred_check_branch
    %164 = sbr.rel (0) target = $region37
  $region36: #{_lambda_.14} parent=0 // pred_region
    _
  $region37: #{_lambda_.14} parent=0 // pred_fallthru
    _
  // Predicated region
  $region38: #{_lambda_.14} parent=0 // pred_check
    _
  $region39: #{_lambda_.14} parent=0 // pred_check_branch
    %166 = sbr.rel (0) target = $region41
  $region40: #{_lambda_.14} parent=0 // pred_region
    _
  $region41: #{_lambda_.14} parent=0 // pred_fallthru
    _

// kernel: _lambda_.15
$region0: #{_lambda_.15}
  #allocation0 [shape = 'u32[]', space=smem, size = 0x4, offset = 0x4, fixed_abs, tag = 'smem constant byte address 0x4 - core index']
  #allocation1 [shape = 'u32[72,128]{1,0:T(1,128)}', space=vmem, size = 0x9000, scoped, tag = 'internal scratch']
  #allocation2 [shape = 'f32[16,64]{1,0:T(8,128)}', space=vmem, size = 0x2000, scoped, tag = 'scratch operand']
  %s0 = inlined_call_operand.vmem [shape: bf16[16,32], index: 0, kind: input, shape index: {}]
  %s1 = inlined_call_operand.vmem [shape: bf16[32,64], index: 1, kind: input, shape index: {}]
  %s2 = inlined_call_operand.vmem [shape: f32[1,64], index: 2, kind: input, shape index: {}]
  %s3 = inlined_call_operand.vmem [shape: bf16[16,64], index: 3, kind: output, shape index: {}]
  %s4 = sld [smem:[#allocation0]]
  $region30: #{_lambda_.15} parent=0
    _
  %s6 = ssub.s32 1, %s4
  %s7 = scalar_select 0, %s6, %s4
  // Predicated region
  $region2: #{_lambda_.15} parent=0 // pred_check
    _
  $region3: #{_lambda_.15} parent=0 // pred_check_branch
    %9 = sbr.rel (0) target = $region5
  $region4: #{_lambda_.15} parent=0 // pred_region
    _
  $region5: #{_lambda_.15} parent=0 // pred_fallthru
    _
  // Predicated region
  $region6: #{_lambda_.15} parent=0 // pred_check
    _
  $region7: #{_lambda_.15} parent=0 // pred_check_branch
    %11 = sbr.rel (0) target = $region9
  $region8: #{_lambda_.15} parent=0 // pred_region
    _
  $region9: #{_lambda_.15} parent=0 // pred_fallthru
    _
  // Predicated region
  $region10: #{_lambda_.15} parent=0 // pred_check
    _
  $region11: #{_lambda_.15} parent=0 // pred_check_branch
    %13 = sbr.rel (0) target = $region13
  $region12: #{_lambda_.15} parent=0 // pred_region
    _
  $region13: #{_lambda_.15} parent=0 // pred_fallthru
    _
  %p15 = scmp.eq.s32.totalorder 0, 0
  // Predicated region
  $region14: #{_lambda_.15} parent=0 // pred_check
    %p16 = pneg %p15
  $region15: #{_lambda_.15} parent=0 // pred_check_branch
    %18 = sbr.rel (%p16) target = $region17
  $region16: #{_lambda_.15} parent=0 // pred_region
    %vm19 = vcmask 523264
    %20 = vst.msk [vmem:[#allocation2] sm:$0xff] %vm19, 0.0
    %21 = vst.msk [vmem:[#allocation2 + $0x8] sm:$0xff] %vm19, 0.0
  $region17: #{_lambda_.15} parent=0 // pred_fallthru
    _
  %v22 = vld [vmem:[#allocation2] sm:$0xff]
  %v23 = vld [vmem:[#allocation2 + $0x8] sm:$0xff]
  %v24 = vld [vmem:[%s0] sm:$0xf]
  %v25 = vld [vmem:[%s0 + $0x4] sm:$0xf]
  %v26 = vld [vmem:[%s1] sm:$0xf]
  %v27 = vld [vmem:[%s1 + $0x4] sm:$0xf]
  %v28 = vld [vmem:[%s1 + $0x8] sm:$0xf]
  %v29 = vld [vmem:[%s1 + $0xc] sm:$0xf]
  %v32 = vunpack.c.l.b16 %v24
  %v33 = vunpack.c.l.b16 %v25
  %v34 = vpack.c.b16 %v33, %v32
  %v39 = vunpack.c.l.b16 %v26
  %v40 = vunpack.c.l.b16 %v27
  %v41 = vunpack.c.l.b16 %v28
  %v42 = vunpack.c.l.b16 %v29
  %v43 = vpack.c.b16 %v40, %v39
  %v44 = vpack.c.b16 %v42, %v41
  %vm47 = vcmask 261120
  %v49 = vsel %vm47, %v34, 0
  %51 = vmatpush.bf16.msra.mxu0 0
  %52 = vmatpush.bf16.msra.mxu0 0
  %53 = vmatpush.bf16.msra.mxu0 0
  %54 = vmatpush.bf16.msra.mxu0 0
  %55 = vmatpush.bf16.msra.mxu0 0
  %56 = vmatpush.bf16.msra.mxu0 0
  %57 = vmatpush.bf16.msra.mxu0 %v44
  %58 = vmatpush.bf16.msra.mxu0 %v43
  %59 = vmatmul.bf16.gmra.mxu0 %v49
  %v60 = vpop.f32.mrf.mxu0
  %v61 = vadd.f32 0.0, %v60
  %v62 = vpop.f32.mrf.mxu0
  %v63 = vadd.f32 0.0, %v62
  %64 = vdwg.mxu0
  %v65 = vadd.f32 %v22, %v61
  %v66 = vadd.f32 %v23, %v63
  %vm67 = vcmask 523264
  %68 = vst.msk [vmem:[#allocation2] sm:$0xff] %vm67, %v65
  %69 = vst.msk [vmem:[#allocation2 + $0x8] sm:$0xff] %vm67, %v66
  // Predicated region
  $region18: #{_lambda_.15} parent=0 // pred_check
    %p70 = pneg %p15
  $region19: #{_lambda_.15} parent=0 // pred_check_branch
    %72 = sbr.rel (%p70) target = $region21
  $region20: #{_lambda_.15} parent=0 // pred_region
    %v73 = vld [vmem:[#allocation2] sm:$0xff]
    %v74 = vld [vmem:[#allocation2 + $0x8] sm:$0xff]
    %v75 = vld [vmem:[%s2] sm:$0x1]
    %v77 = vperm.slane %v75, 0
    %v79 = vadd.f32 %v73, %v77
    %v80 = vadd.f32 %v74, %v77
    %v81 = vmul.f32 %v79, 0.5
    %v82 = vmul.f32 %v80, 0.5
    %v83 = vmul.f32 %v79, 0.044715
    %v84 = vmul.f32 %v80, 0.044715
    %v85 = vmul.f32 %v83, %v79
    %v86 = vmul.f32 %v84, %v80
    %v87 = vmul.f32 %v85, %v79
    %v88 = vmul.f32 %v86, %v80
    %v89 = vadd.f32 %v79, %v87
    %v90 = vadd.f32 %v80, %v88
    %v91 = vmul.f32 %v89, 0.7978846
    %v92 = vmul.f32 %v90, 0.7978846
    %v93 = vtanh.pop %v91
    %v94 = vtanh.pop %v92
    %v95 = vadd.f32 %v93, 1.0
    %v96 = vadd.f32 %v94, 1.0
    %v97 = vmul.f32 %v81, %v95
    %v98 = vmul.f32 %v82, %v96
    %v99 = vpack.c.bf16 %v97, %v97
    %v100 = vpack.c.bf16 %v98, %v98
    %vm101 = vcmask 519168
    %102 = vst.msk [vmem:[%s3] sm:$0xf] %vm101, %v99
    %103 = vst.msk [vmem:[%s3 + $0x4] sm:$0xf] %vm101, %v100
  $region21: #{_lambda_.15} parent=0 // pred_fallthru
    _
  // Predicated region
  $region22: #{_lambda_.15} parent=0 // pred_check
    _
  $region23: #{_lambda_.15} parent=0 // pred_check_branch
    %105 = sbr.rel (0) target = $region25
  $region24: #{_lambda_.15} parent=0 // pred_region
    _
  $region25: #{_lambda_.15} parent=0 // pred_fallthru
    _
  // Predicated region
  $region26: #{_lambda_.15} parent=0 // pred_check
    _
  $region27: #{_lambda_.15} parent=0 // pred_check_branch
    %107 = sbr.rel (0) target = $region29
  $region28: #{_lambda_.15} parent=0 // pred_region
    _
  $region29: #{_lambda_.15} parent=0 // pred_fallthru
    _

// kernel: _lambda_.16
$region0: #{_lambda_.16}
  #allocation0 [shape = 'u32[]', space=smem, size = 0x4, offset = 0x4, fixed_abs, tag = 'smem constant byte address 0x4 - core index']
  #allocation1 [shape = 'u32[72,128]{1,0:T(1,128)}', space=vmem, size = 0x9000, scoped, tag = 'internal scratch']
  #allocation2 [shape = 'f32[16,32]{1,0:T(8,128)}', space=vmem, size = 0x2000, scoped, tag = 'scratch operand']
  %s0 = inlined_call_operand.vmem [shape: bf16[16,64], index: 0, kind: input, shape index: {}]
  %s1 = inlined_call_operand.vmem [shape: bf16[64,32], index: 1, kind: input, shape index: {}]
  %s2 = inlined_call_operand.vmem [shape: f32[1,32], index: 2, kind: input, shape index: {}]
  %s3 = inlined_call_operand.vmem [shape: bf16[16,32], index: 3, kind: input, shape index: {}]
  %s4 = inlined_call_operand.vmem [shape: f32[1,32], index: 4, kind: input, shape index: {}]
  %s5 = inlined_call_operand.vmem [shape: f32[1,32], index: 5, kind: input, shape index: {}]
  %s6 = inlined_call_operand.vmem [shape: bf16[16,32], index: 6, kind: output, shape index: {}]
  %s7 = sld [smem:[#allocation0]]
  $region42: #{_lambda_.16} parent=0
    _
  %s9 = ssub.s32 1, %s7
  %s10 = scalar_select 0, %s9, %s7
  // Predicated region
  $region2: #{_lambda_.16} parent=0 // pred_check
    _
  $region3: #{_lambda_.16} parent=0 // pred_check_branch
    %12 = sbr.rel (0) target = $region5
  $region4: #{_lambda_.16} parent=0 // pred_region
    _
  $region5: #{_lambda_.16} parent=0 // pred_fallthru
    _
  // Predicated region
  $region6: #{_lambda_.16} parent=0 // pred_check
    _
  $region7: #{_lambda_.16} parent=0 // pred_check_branch
    %14 = sbr.rel (0) target = $region9
  $region8: #{_lambda_.16} parent=0 // pred_region
    _
  $region9: #{_lambda_.16} parent=0 // pred_fallthru
    _
  // Predicated region
  $region10: #{_lambda_.16} parent=0 // pred_check
    _
  $region11: #{_lambda_.16} parent=0 // pred_check_branch
    %16 = sbr.rel (0) target = $region13
  $region12: #{_lambda_.16} parent=0 // pred_region
    _
  $region13: #{_lambda_.16} parent=0 // pred_fallthru
    _
  // Predicated region
  $region14: #{_lambda_.16} parent=0 // pred_check
    _
  $region15: #{_lambda_.16} parent=0 // pred_check_branch
    %18 = sbr.rel (0) target = $region17
  $region16: #{_lambda_.16} parent=0 // pred_region
    _
  $region17: #{_lambda_.16} parent=0 // pred_fallthru
    _
  // Predicated region
  $region18: #{_lambda_.16} parent=0 // pred_check
    _
  $region19: #{_lambda_.16} parent=0 // pred_check_branch
    %20 = sbr.rel (0) target = $region21
  $region20: #{_lambda_.16} parent=0 // pred_region
    _
  $region21: #{_lambda_.16} parent=0 // pred_fallthru
    _
  // Predicated region
  $region22: #{_lambda_.16} parent=0 // pred_check
    _
  $region23: #{_lambda_.16} parent=0 // pred_check_branch
    %22 = sbr.rel (0) target = $region25
  $region24: #{_lambda_.16} parent=0 // pred_region
    _
  $region25: #{_lambda_.16} parent=0 // pred_fallthru
    _
  %p24 = scmp.eq.s32.totalorder 0, 0
  // Predicated region
  $region26: #{_lambda_.16} parent=0 // pred_check
    %p25 = pneg %p24
  $region27: #{_lambda_.16} parent=0 // pred_check_branch
    %27 = sbr.rel (%p25) target = $region29
  $region28: #{_lambda_.16} parent=0 // pred_region
    %vm28 = vcmask 261120
    %29 = vst.msk [vmem:[#allocation2] sm:$0xff] %vm28, 0.0
    %30 = vst.msk [vmem:[#allocation2 + $0x8] sm:$0xff] %vm28, 0.0
  $region29: #{_lambda_.16} parent=0 // pred_fallthru
    _
  %v31 = vld [vmem:[#allocation2] sm:$0xff]
  %v32 = vld [vmem:[#allocation2 + $0x8] sm:$0xff]
  %v33 = vld [vmem:[%s0] sm:$0xf]
  %v34 = vld [vmem:[%s0 + $0x4] sm:$0xf]
  %v35 = vld [vmem:[%s1] sm:$0xf]
  %v36 = vld [vmem:[%s1 + $0x4] sm:$0xf]
  %v37 = vld [vmem:[%s1 + $0x8] sm:$0xf]
  %v38 = vld [vmem:[%s1 + $0xc] sm:$0xf]
  %v39 = vld [vmem:[%s1 + $0x10] sm:$0xf]
  %v40 = vld [vmem:[%s1 + $0x14] sm:$0xf]
  %v41 = vld [vmem:[%s1 + $0x18] sm:$0xf]
  %v42 = vld [vmem:[%s1 + $0x1c] sm:$0xf]
  %v45 = vunpack.c.l.b16 %v33
  %v46 = vunpack.c.l.b16 %v34
  %v47 = vpack.c.b16 %v46, %v45
  %v56 = vunpack.c.l.b16 %v35
  %v57 = vunpack.c.l.b16 %v36
  %v58 = vunpack.c.l.b16 %v37
  %v59 = vunpack.c.l.b16 %v38
  %v60 = vunpack.c.l.b16 %v39
  %v61 = vunpack.c.l.b16 %v40
  %v62 = vunpack.c.l.b16 %v41
  %v63 = vunpack.c.l.b16 %v42
  %v64 = vpack.c.b16 %v57, %v56
  %v65 = vpack.c.b16 %v59, %v58
  %v66 = vpack.c.b16 %v61, %v60
  %v67 = vpack.c.b16 %v63, %v62
  %vm72 = vcmask 523264
  %v74 = vsel %vm72, %v47, 0
  %76 = vmatpush.bf16.msra.mxu0 0
  %77 = vmatpush.bf16.msra.mxu0 0
  %78 = vmatpush.bf16.msra.mxu0 0
  %79 = vmatpush.bf16.msra.mxu0 0
  %80 = vmatpush.bf16.msra.mxu0 %v67
  %81 = vmatpush.bf16.msra.mxu0 %v66
  %82 = vmatpush.bf16.msra.mxu0 %v65
  %83 = vmatpush.bf16.msra.mxu0 %v64
  %84 = vmatmul.bf16.gmra.mxu0 %v74
  %v85 = vpop.f32.mrf.mxu0
  %v86 = vadd.f32 0.0, %v85
  %v87 = vpop.f32.mrf.mxu0
  %v88 = vadd.f32 0.0, %v87
  %89 = vdwg.mxu0
  %v90 = vadd.f32 %v31, %v86
  %v91 = vadd.f32 %v32, %v88
  %vm92 = vcmask 261120
  %93 = vst.msk [vmem:[#allocation2] sm:$0xff] %vm92, %v90
  %94 = vst.msk [vmem:[#allocation2 + $0x8] sm:$0xff] %vm92, %v91
  // Predicated region
  $region30: #{_lambda_.16} parent=0 // pred_check
    %p95 = pneg %p24
  $region31: #{_lambda_.16} parent=0 // pred_check_branch
    %97 = sbr.rel (%p95) target = $region33
  $region32: #{_lambda_.16} parent=0 // pred_region
    %v98 = vld [vmem:[#allocation2] sm:$0xff]
    %v99 = vld [vmem:[#allocation2 + $0x8] sm:$0xff]
    %v100 = vld [vmem:[%s2] sm:$0x1]
    %v102 = vperm.slane %v100, 0
    %v104 = vadd.f32 %v98, %v102
    %v105 = vadd.f32 %v99, %v102
    %v106 = vld [vmem:[%s3] sm:$0xf]
    %v107 = vld [vmem:[%s3 + $0x4] sm:$0xf]
    %v108 = vunpack.c.l.bf16 %v106
    %v109 = vunpack.c.l.bf16 %v107
    %v110 = vadd.f32 %v104, %v108
    %v111 = vadd.f32 %v105, %v109
    %v112 = vsel %vm92, %v110, 0.0
    %113 = vadd.xlane.f32.xlu0 %v112
    %v114 = vpop.xlane.xlu0 %113
    %v115 = vsel %vm92, %v111, 0.0
    %116 = vadd.xlane.f32.xlu0 %v115
    %v117 = vpop.xlane.xlu0 %116
    %v118 = vrcp.pop 32.0
    %v119 = vmul.f32 32.0, %v118
    %v120 = vsub.f32 1.0, %v119
    %v121 = vmul.f32 %v118, %v120
    %v122 = vadd.f32 %v118, %v121
    %vm123 = vweird.f32 %v118
    %v124 = vsel %vm123, %v118, %v122
    %v125 = vmul.f32 %v114, %v124
    %v126 = vmul.f32 %v117, %v124
    %v127 = vsub.f32 %v110, %v125
    %v128 = vsub.f32 %v111, %v126
    %v129 = vmul.f32 %v127, %v127
    %v130 = vmul.f32 %v128, %v128
    %v131 = vsel %vm92, %v129, 0.0
    %132 = vadd.xlane.f32.xlu0 %v131
    %v133 = vpop.xlane.xlu0 %132
    %v134 = vsel %vm92, %v130, 0.0
    %135 = vadd.xlane.f32.xlu0 %v134
    %v136 = vpop.xlane.xlu0 %135
    %v137 = vmul.f32 %v133, %v124
    %v138 = vmul.f32 %v136, %v124
    %v139 = vadd.f32 %v137, 1e-12
    %v140 = vadd.f32 %v138, 1e-12
    %v141 = vrsqrt.pop %v139
    %v142 = vmul.f32 %v141, %v139
    %v143 = vmul.f32 %v142, %v141
    %v144 = vmul.f32 0.5, %v143
    %v145 = vsub.f32 1.5, %v144
    %v146 = vmul.f32 %v141, %v145
    %vm147 = vweird.f32 %v139
    %vm148 = vweird.f32 %v141
    %vm149 = vmor %vm147, %vm148
    %v150 = vsel %vm149, %v141, %v146
    %v151 = vrsqrt.pop %v140
    %v152 = vmul.f32 %v151, %v140
    %v153 = vmul.f32 %v152, %v151
    %v154 = vmul.f32 0.5, %v153
    %v155 = vsub.f32 1.5, %v154
    %v156 = vmul.f32 %v151, %v155
    %vm157 = vweird.f32 %v140
    %vm158 = vweird.f32 %v151
    %vm159 = vmor %vm157, %vm158
    %v160 = vsel %vm159, %v151, %v156
    %v161 = vmul.f32 %v127, %v150
    %v162 = vmul.f32 %v128, %v160
    %v163 = vld [vmem:[%s4] sm:$0x1]
    %v165 = vperm.slane %v163, 0
    %v167 = vmul.f32 %v161, %v165
    %v168 = vmul.f32 %v162, %v165
    %v169 = vld [vmem:[%s5] sm:$0x1]
    %v171 = vperm.slane %v169, 0
    %v173 = vadd.f32 %v167, %v171
    %v174 = vadd.f32 %v168, %v171
    %v175 = vpack.c.bf16 %v173, %v173
    %v176 = vpack.c.bf16 %v174, %v174
    %vm177 = vcmask 257024
    %178 = vst.msk [vmem:[%s6] sm:$0xf] %vm177, %v175
    %179 = vst.msk [vmem:[%s6 + $0x4] sm:$0xf] %vm177, %v176
  $region33: #{_lambda_.16} parent=0 // pred_fallthru
    _
  // Predicated region
  $region34: #{_lambda_.16} parent=0 // pred_check
    _
  $region35: #{_lambda_.16} parent=0 // pred_check_branch
    %181 = sbr.rel (0) target = $region37
  $region36: #{_lambda_.16} parent=0 // pred_region
    _
  $region37: #{_lambda_.16} parent=0 // pred_fallthru
    _
  // Predicated region
  $region38: #{_lambda_.16} parent=0 // pred_check
    _
  $region39: #{_lambda_.16} parent=0 // pred_check_branch
    %183 = sbr.rel (0) target = $region41
  $region40: #{_lambda_.16} parent=0 // pred_region
    _
  $region41: #{_lambda_.16} parent=0 // pred_fallthru
    _

</llo_original>
